<compile_context>
chip_gen: v7x
topology: tpu7x:2x2x1
jax: 0.10.0
libtpu: 0.0.40
codegen_flags: <defaults>
</compile_context>

<pallas_src>
import jax
import jax.numpy as jnp
import numpy as np
from jax import lax
from jax.experimental import pallas as pl
from jax.experimental.pallas import tpu as pltpu


def fused_attention_kernel(xq_ref, xkv_ref, wq_ref, wk_ref, wv_ref,
                           wo_ref, bo_ref, o_ref,
                           q_s, m_s, l_s, acc_s, proj_s):
    """Grid = (batch, q_tile, head, kv_tile); head/kv_tile are reduction axes.

    Shapes seen by the kernel (dh = dim_head, C = input channels, d_out = dim):
      xq_ref : (1, C, tq)        x columns for this q tile
      xkv_ref: (1, C, tk)        x columns for this kv tile
      wq/wk/wv_ref: (1, dh, C)   per-head projection weights (scale folded in q)
      wo_ref : (1, d_out, dh)    per-head slice of the output projection
      bo_ref : (d_out, 1)        output bias
      o_ref  : (1, d_out, tq)    output tile (written on last head+kv step)
    """
    h = pl.program_id(2)
    ki = pl.program_id(3)
    num_heads = pl.num_programs(2)
    num_kv = pl.num_programs(3)

    cdt = xq_ref.dtype                      # MXU compute dtype (= input dtype)
    dims = (((1,), (0,)), ((), ()))         # contract lhs[1] with rhs[0]

    @pl.when((h == 0) & (ki == 0))
    def _():
        # New (batch, q_tile): seed the output-projection accumulator with the
        # conv bias so the epilogue needs no extra add.
        proj_s[...] = jnp.broadcast_to(bo_ref[...].astype(jnp.float32),
                                       proj_s.shape)

    @pl.when(ki == 0)
    def _():
        # New head: project (pre-scaled) Q once and reset online-softmax state.
        q32 = lax.dot_general(wq_ref[0], xq_ref[0], dims,
                              preferred_element_type=jnp.float32)   # (dh, tq)
        q_s[...] = q32.astype(q_s.dtype)
        m_s[...] = jnp.full(m_s.shape, -jnp.inf, jnp.float32)
        l_s[...] = jnp.zeros(l_s.shape, jnp.float32)
        acc_s[...] = jnp.zeros(acc_s.shape, jnp.float32)

    # Project K, V for this kv tile (contraction over tiny C; lane-dense result).
    x_kv = xkv_ref[0]                                                 # (C, tk)
    k = lax.dot_general(wk_ref[0], x_kv, dims,
                        preferred_element_type=jnp.float32).astype(cdt)  # (dh, tk)
    v = lax.dot_general(wv_ref[0], x_kv, dims,
                        preferred_element_type=jnp.float32).astype(cdt)  # (dh, tk)

    # sim^T[j, i] = sum_d k[d, j] * q[d, i]  -> (tk, tq); softmax over axis 0.
    s = lax.dot_general(k, q_s[...], (((0,), (0,)), ((), ())),
                        preferred_element_type=jnp.float32)           # (tk, tq)

    # Online softmax update (all f32).
    m_prev = m_s[...]                                                 # (1, tq)
    m_new = jnp.maximum(m_prev, jnp.max(s, axis=0, keepdims=True))
    alpha = jnp.exp(m_prev - m_new)                                   # (1, tq)
    p = jnp.exp(s - m_new)                                            # (tk, tq)
    l_s[...] = alpha * l_s[...] + jnp.sum(p, axis=0, keepdims=True)
    acc_s[...] = alpha * acc_s[...] + lax.dot_general(
        v, p.astype(cdt), dims, preferred_element_type=jnp.float32)   # (dh, tq)
    m_s[...] = m_new

    @pl.when(ki == num_kv - 1)
    def _():
        # Normalize this head's output and fold it straight into the output
        # 1x1-conv accumulator (per-head accumulation, no concat).
        out_h = acc_s[...] * (1.0 / l_s[...])                         # (dh, tq)
        proj_s[...] += lax.dot_general(
            wo_ref[0], out_h.astype(wo_ref.dtype), dims,
            preferred_element_type=jnp.float32)                       # (d_out, tq)

    @pl.when((h == num_heads - 1) & (ki == num_kv - 1))
    def _():
        o_ref[0] = proj_s[...].astype(o_ref.dtype)


def _pick_tile(n, cap=512):
    """Largest multiple of 128 that divides n and is <= cap, else n itself."""
    # TODO(synk): for N not a multiple of 128 this falls back to a single
    # full-N tile; a padded + masked-softmax variant would keep tiling there.
    t = min(cap, n)
    t = (t // 128) * 128
    while t >= 128:
        if n % t == 0:
            return t
        t -= 128
    return n


def attention_forward(x, w_qkv, w_out, b_out, *, heads, dim_head,
                      q_tile=None, kv_tile=None):
    """x: (B, C, H, W); w_qkv: (3*heads*dim_head, C); w_out: (dim, heads*dim_head);
    b_out: (dim,).  Returns (B, dim, H, W)."""
    B, C, H, W = x.shape
    N = H * W
    hidden = heads * dim_head
    out_dim = w_out.shape[0]
    assert w_qkv.shape == (3 * hidden, C)
    assert w_out.shape == (out_dim, hidden)
    scale = dim_head ** (-0.5)

    tq = q_tile if q_tile is not None else _pick_tile(N)
    tk = kv_tile if kv_tile is not None else _pick_tile(N)
    assert N % tq == 0 and N % tk == 0, (N, tq, tk)

    # Channel-major flattened-spatial layout: lanes carry spatial positions.
    x_bcn = x.reshape(B, C, N)

    # Fold the softmax scale into the Q projection weights and reshape so each
    # (head, {q,k,v}) slice is a full-dim block: (3*heads, dim_head, C).
    w3 = w_qkv.astype(x.dtype).reshape(3, heads, dim_head, C)
    w3 = w3.at[0].multiply(jnp.asarray(scale, x.dtype))
    w3 = w3.reshape(3 * heads, dim_head, C)

    # Output projection reshaped to per-head slices: (heads, out_dim, dim_head).
    wo = w_out.astype(x.dtype).reshape(out_dim, heads, dim_head).transpose(1, 0, 2)
    b2 = b_out.astype(jnp.float32).reshape(out_dim, 1)

    grid = (B, N // tq, heads, N // tk)

    out_bcn = pl.pallas_call(
        fused_attention_kernel,
        out_shape=jax.ShapeDtypeStruct((B, out_dim, N), x.dtype),
        grid_spec=pltpu.PrefetchScalarGridSpec(
            num_scalar_prefetch=0,
            grid=grid,
            in_specs=[
                # x for the q columns and the kv columns (same array, two views).
                pl.BlockSpec((1, C, tq), lambda b, qi, h, ki: (b, 0, qi)),
                pl.BlockSpec((1, C, tk), lambda b, qi, h, ki: (b, 0, ki)),
                # per-head Q / K / V projection weights (same array, 3 views).
                pl.BlockSpec((1, dim_head, C),
                             lambda b, qi, h, ki: (h, 0, 0)),
                pl.BlockSpec((1, dim_head, C),
                             lambda b, qi, h, ki: (heads + h, 0, 0)),
                pl.BlockSpec((1, dim_head, C),
                             lambda b, qi, h, ki: (2 * heads + h, 0, 0)),
                # per-head slice of the output projection + bias.
                pl.BlockSpec((1, out_dim, dim_head),
                             lambda b, qi, h, ki: (h, 0, 0)),
                pl.BlockSpec((out_dim, 1), lambda b, qi, h, ki: (0, 0)),
            ],
            out_specs=pl.BlockSpec((1, out_dim, tq),
                                   lambda b, qi, h, ki: (b, 0, qi)),
            scratch_shapes=[
                pltpu.VMEM((dim_head, tq), x.dtype),     # q_s  (projected Q)
                pltpu.VMEM((1, tq), jnp.float32),        # m_s  (running max)
                pltpu.VMEM((1, tq), jnp.float32),        # l_s  (running denom)
                pltpu.VMEM((dim_head, tq), jnp.float32), # acc_s (P @ V accum)
                pltpu.VMEM((out_dim, tq), jnp.float32),  # proj_s (output conv)
            ],
        ),
        compiler_params=pltpu.CompilerParams(
            dimension_semantics=("parallel", "parallel", "arbitrary", "arbitrary"),
            vmem_limit_bytes=32 * 1024 * 1024,
        ),
    )(x_bcn, x_bcn, w3, w3, w3, wo, b2)

    return out_bcn.reshape(B, out_dim, H, W)


def attention_reference(x, w_qkv, w_out, b_out, *, heads, dim_head):
    """Pure-JAX reference mirroring the PyTorch forward exactly."""
    B, C, H, W = x.shape
    N = H * W
    hidden = heads * dim_head
    out_dim = w_out.shape[0]
    scale = dim_head ** (-0.5)

    xf = x.reshape(B, C, N)                                   # (B, C, N)
    qkv = jnp.einsum('oc,bcn->bon', w_qkv, xf)                # (B, 3*hidden, N)
    q, k, v = jnp.split(qkv, 3, axis=1)                       # each (B, hidden, N)

    def split_heads(t):                                       # -> (B, heads, dh, N)
        return t.reshape(B, heads, dim_head, N)

    q, k, v = map(split_heads, (q, k, v))
    q = q * scale
    sim = jnp.einsum('bhdi,bhdj->bhij', q, k)
    sim = sim - jnp.max(sim, axis=-1, keepdims=True)
    attn = jax.nn.softmax(sim, axis=-1)
    out = jnp.einsum('bhij,bhdj->bhid', attn, v)              # (B, heads, N, dh)
    out = jnp.transpose(out, (0, 1, 3, 2)).reshape(B, hidden, N)   # b (h d) n
    final = jnp.einsum('oc,bcn->bon', w_out, out) + b_out[None, :, None]
    return final.reshape(B, out_dim, H, W)


if __name__ == "__main__":
    # Small deterministic problem consistent with the module defaults:
    # dim=4 input channels, heads=4, dim_head=32 (hidden=128), spatial 16x16
    # (N=256 positions), batch=2.
    B, DIM, H, W = 2, 4, 16, 16
    HEADS, DIM_HEAD = 4, 32
    HIDDEN = HEADS * DIM_HEAD

    key = jax.random.PRNGKey(0)
    kx, kqkv, kwo, kbo = jax.random.split(key, 4)

    x = jax.random.normal(kx, (B, DIM, H, W), dtype=jnp.float32)
    # Conv2d weights with the 1x1 kernel dims squeezed: (out_ch, in_ch).
    w_qkv = jax.random.normal(kqkv, (3 * HIDDEN, DIM), dtype=jnp.float32) * 0.1
    w_out = jax.random.normal(kwo, (DIM, HIDDEN), dtype=jnp.float32) * 0.1
    b_out = jax.random.normal(kbo, (DIM,), dtype=jnp.float32) * 0.1

    ref = attention_reference(x, w_qkv, w_out, b_out,
                              heads=HEADS, dim_head=DIM_HEAD)
    ref = jax.block_until_ready(ref)

    # Multi-tile path: 2 q tiles x 4 heads x 2 kv tiles -> exercises the online
    # softmax accumulation and per-head output-projection accumulation.
    out = attention_forward(x, w_qkv, w_out, b_out, heads=HEADS,
                            dim_head=DIM_HEAD, q_tile=128, kv_tile=128)
    out = jax.block_until_ready(out)
    assert out.shape == (B, DIM, H, W), out.shape
    np.testing.assert_allclose(np.asarray(out), np.asarray(ref),
                               rtol=1e-4, atol=1e-4)

    # Default tile selection (single q/kv tile here).
    out2 = attention_forward(x, w_qkv, w_out, b_out,
                             heads=HEADS, dim_head=DIM_HEAD)
    out2 = jax.block_until_ready(out2)
    np.testing.assert_allclose(np.asarray(out2), np.asarray(ref),
                               rtol=1e-4, atol=1e-4)

    print("KERNEL_OK")
</pallas_src>

<mosaic_0001>
module attributes {stable_mosaic.version = 11 : i64} {
  func.func @fused_attention_kernel(%arg0: i32, %arg1: i32, %arg2: i32, %arg3: i32, %arg4: memref<1x4x128xf32, #tpu.memory_space<vmem>>, %arg5: memref<1x4x128xf32, #tpu.memory_space<vmem>>, %arg6: memref<1x32x4xf32, #tpu.memory_space<vmem>>, %arg7: memref<1x32x4xf32, #tpu.memory_space<vmem>>, %arg8: memref<1x32x4xf32, #tpu.memory_space<vmem>>, %arg9: memref<1x4x32xf32, #tpu.memory_space<vmem>>, %arg10: memref<4x1xf32, #tpu.memory_space<vmem>>, %arg11: memref<1x4x128xf32, #tpu.memory_space<vmem>>, %arg12: memref<32x128xf32, #tpu.memory_space<vmem>>, %arg13: memref<1x128xf32, #tpu.memory_space<vmem>>, %arg14: memref<1x128xf32, #tpu.memory_space<vmem>>, %arg15: memref<32x128xf32, #tpu.memory_space<vmem>>, %arg16: memref<4x128xf32, #tpu.memory_space<vmem>>) attributes {dimension_semantics = [#tpu.dimension_semantics<parallel>, #tpu.dimension_semantics<parallel>, #tpu.dimension_semantics<arbitrary>, #tpu.dimension_semantics<arbitrary>], iteration_bounds = array<i64: 2, 2, 4, 2>, scalar_prefetch = 0 : i64, scratch_operands = 5 : i64, tpu.core_type = #tpu.core_type<tc>, window_params = [{transform_indices = @transform_0, window_bounds = array<i64: 1, 4, 128>}, {transform_indices = @transform_1, window_bounds = array<i64: 1, 4, 128>}, {transform_indices = @transform_2, window_bounds = array<i64: 1, 32, 4>}, {transform_indices = @transform_3, window_bounds = array<i64: 1, 32, 4>}, {transform_indices = @transform_4, window_bounds = array<i64: 1, 32, 4>}, {transform_indices = @transform_5, window_bounds = array<i64: 1, 4, 32>}, {pipeline_mode = #tpu.pipeline_mode<synchronous>, transform_indices = @transform_6, window_bounds = array<i64: 4, 1>}, {transform_indices = @transform_7, window_bounds = array<i64: 1, 4, 128>}]} {
    %c0_i32 = arith.constant 0 : i32
    %0 = arith.cmpi eq, %arg2, %c0_i32 : i32
    %c0_i32_0 = arith.constant 0 : i32
    %1 = arith.cmpi eq, %arg3, %c0_i32_0 : i32
    %2 = arith.andi %0, %1 : i1
    %3 = arith.extui %2 : i1 to i32
    %c0_i32_1 = arith.constant 0 : i32
    %4 = arith.cmpi ne, %3, %c0_i32_1 : i32
    scf.if %4 {
      %c0_34 = arith.constant 0 : index
      %c0_35 = arith.constant 0 : index
      %48 = vector.load %arg10[%c0_34, %c0_35] : memref<4x1xf32, #tpu.memory_space<vmem>>, vector<4x1xf32>
      %49 = vector.shape_cast %48 : vector<4x1xf32> to vector<4x1xf32>
      %50 = vector.broadcast %49 : vector<4x1xf32> to vector<4x128xf32>
      %c0_36 = arith.constant 0 : index
      %c0_37 = arith.constant 0 : index
      %51 = vector.load %arg16[%c0_36, %c0_37] : memref<4x128xf32, #tpu.memory_space<vmem>>, vector<4x128xf32>
      tpu.vector_store %arg16[%c0_36, %c0_37], %50 {strides = array<i32>} : memref<4x128xf32, #tpu.memory_space<vmem>>, vector<4x128xf32>,
    } else {
    }
    %c0_i32_2 = arith.constant 0 : i32
    %5 = arith.cmpi eq, %arg3, %c0_i32_2 : i32
    %6 = arith.extui %5 : i1 to i32
    %c0_i32_3 = arith.constant 0 : i32
    %7 = arith.cmpi ne, %6, %c0_i32_3 : i32
    scf.if %7 {
      %c0_34 = arith.constant 0 : index
      %c0_35 = arith.constant 0 : index
      %c0_36 = arith.constant 0 : index
      %48 = vector.load %arg6[%c0_34, %c0_35, %c0_36] : memref<1x32x4xf32, #tpu.memory_space<vmem>>, vector<1x32x4xf32>
      %49 = vector.shape_cast %48 : vector<1x32x4xf32> to vector<32x4xf32>
      %c0_37 = arith.constant 0 : index
      %c0_38 = arith.constant 0 : index
      %c0_39 = arith.constant 0 : index
      %50 = vector.load %arg4[%c0_37, %c0_38, %c0_39] : memref<1x4x128xf32, #tpu.memory_space<vmem>>, vector<1x4x128xf32>
      %51 = vector.shape_cast %50 : vector<1x4x128xf32> to vector<4x128xf32>
      %cst_40 = arith.constant dense<0.000000e+00> : vector<32x128xf32>
      %52 = tpu.matmul %49, %51, %cst_40 {dimension_numbers = #tpu.dot_dimension_numbers<[1], [0], [0], [1], [0, 0, 1, 1], [], []>} : vector<32x4xf32>, vector<4x128xf32>, vector<32x128xf32> -> vector<32x128xf32>
      %c0_41 = arith.constant 0 : index
      %c0_42 = arith.constant 0 : index
      %53 = vector.load %arg12[%c0_41, %c0_42] : memref<32x128xf32, #tpu.memory_space<vmem>>, vector<32x128xf32>
      tpu.vector_store %arg12[%c0_41, %c0_42], %52 {strides = array<i32>} : memref<32x128xf32, #tpu.memory_space<vmem>>, vector<32x128xf32>,
      %cst_43 = arith.constant 0xFF800000 : f32
      %54 = vector.broadcast %cst_43 : f32 to vector<1x128xf32>
      %c0_44 = arith.constant 0 : index
      %c0_45 = arith.constant 0 : index
      %55 = vector.load %arg13[%c0_44, %c0_45] : memref<1x128xf32, #tpu.memory_space<vmem>>, vector<1x128xf32>
      tpu.vector_store %arg13[%c0_44, %c0_45], %54 {strides = array<i32>} : memref<1x128xf32, #tpu.memory_space<vmem>>, vector<1x128xf32>,
      %cst_46 = arith.constant 0.000000e+00 : f32
      %56 = vector.broadcast %cst_46 : f32 to vector<1x128xf32>
      %c0_47 = arith.constant 0 : index
      %c0_48 = arith.constant 0 : index
      %57 = vector.load %arg14[%c0_47, %c0_48] : memref<1x128xf32, #tpu.memory_space<vmem>>, vector<1x128xf32>
      tpu.vector_store %arg14[%c0_47, %c0_48], %56 {strides = array<i32>} : memref<1x128xf32, #tpu.memory_space<vmem>>, vector<1x128xf32>,
      %cst_49 = arith.constant 0.000000e+00 : f32
      %58 = vector.broadcast %cst_49 : f32 to vector<32x128xf32>
      %c0_50 = arith.constant 0 : index
      %c0_51 = arith.constant 0 : index
      %59 = vector.load %arg15[%c0_50, %c0_51] : memref<32x128xf32, #tpu.memory_space<vmem>>, vector<32x128xf32>
      tpu.vector_store %arg15[%c0_50, %c0_51], %58 {strides = array<i32>} : memref<32x128xf32, #tpu.memory_space<vmem>>, vector<32x128xf32>,
    } else {
    }
    %c0 = arith.constant 0 : index
    %c0_4 = arith.constant 0 : index
    %c0_5 = arith.constant 0 : index
    %8 = vector.load %arg5[%c0, %c0_4, %c0_5] : memref<1x4x128xf32, #tpu.memory_space<vmem>>, vector<1x4x128xf32>
    %9 = vector.shape_cast %8 : vector<1x4x128xf32> to vector<4x128xf32>
    %c0_6 = arith.constant 0 : index
    %c0_7 = arith.constant 0 : index
    %c0_8 = arith.constant 0 : index
    %10 = vector.load %arg7[%c0_6, %c0_7, %c0_8] : memref<1x32x4xf32, #tpu.memory_space<vmem>>, vector<1x32x4xf32>
    %11 = vector.shape_cast %10 : vector<1x32x4xf32> to vector<32x4xf32>
    %cst = arith.constant dense<0.000000e+00> : vector<32x128xf32>
    %12 = tpu.matmul %11, %9, %cst {dimension_numbers = #tpu.dot_dimension_numbers<[1], [0], [0], [1], [0, 0, 1, 1], [], []>} : vector<32x4xf32>, vector<4x128xf32>, vector<32x128xf32> -> vector<32x128xf32>
    %c0_9 = arith.constant 0 : index
    %c0_10 = arith.constant 0 : index
    %c0_11 = arith.constant 0 : index
    %13 = vector.load %arg8[%c0_9, %c0_10, %c0_11] : memref<1x32x4xf32, #tpu.memory_space<vmem>>, vector<1x32x4xf32>
    %14 = vector.shape_cast %13 : vector<1x32x4xf32> to vector<32x4xf32>
    %cst_12 = arith.constant dense<0.000000e+00> : vector<32x128xf32>
    %15 = tpu.matmul %14, %9, %cst_12 {dimension_numbers = #tpu.dot_dimension_numbers<[1], [0], [0], [1], [0, 0, 1, 1], [], []>} : vector<32x4xf32>, vector<4x128xf32>, vector<32x128xf32> -> vector<32x128xf32>
    %c0_13 = arith.constant 0 : index
    %c0_14 = arith.constant 0 : index
    %16 = vector.load %arg12[%c0_13, %c0_14] : memref<32x128xf32, #tpu.memory_space<vmem>>, vector<32x128xf32>
    %cst_15 = arith.constant dense<0.000000e+00> : vector<128x128xf32>
    %17 = tpu.matmul %12, %16, %cst_15 {dimension_numbers = #tpu.dot_dimension_numbers<[0], [0], [1], [1], [0, 1, 1, 1], [], []>} : vector<32x128xf32>, vector<32x128xf32>, vector<128x128xf32> -> vector<128x128xf32>
    %c0_16 = arith.constant 0 : index
    %c0_17 = arith.constant 0 : index
    %18 = vector.load %arg13[%c0_16, %c0_17] : memref<1x128xf32, #tpu.memory_space<vmem>>, vector<1x128xf32>
    %cst_18 = arith.constant dense<0xFF800000> : vector<128xf32>
    %19 = vector.multi_reduction <maximumf>, %17, %cst_18 [0] : vector<128x128xf32> to vector<128xf32>
    %20 = vector.shape_cast %19 : vector<128xf32> to vector<1x128xf32>
    %21 = arith.maximumf %18, %20 : vector<1x128xf32>
    %22 = arith.subf %18, %21 : vector<1x128xf32>
    %23 = math.exp %22 : vector<1x128xf32>
    %24 = vector.broadcast %21 : vector<1x128xf32> to vector<128x128xf32>
    %25 = arith.subf %17, %24 : vector<128x128xf32>
    %26 = math.exp %25 : vector<128x128xf32>
    %c0_19 = arith.constant 0 : index
    %c0_20 = arith.constant 0 : index
    %27 = vector.load %arg14[%c0_19, %c0_20] : memref<1x128xf32, #tpu.memory_space<vmem>>, vector<1x128xf32>
    %28 = arith.mulf %23, %27 : vector<1x128xf32>
    %cst_21 = arith.constant dense<0.000000e+00> : vector<128xf32>
    %29 = vector.multi_reduction <add>, %26, %cst_21 [0] : vector<128x128xf32> to vector<128xf32>
    %30 = vector.shape_cast %29 : vector<128xf32> to vector<1x128xf32>
    %31 = arith.addf %28, %30 : vector<1x128xf32>
    %c0_22 = arith.constant 0 : index
    %c0_23 = arith.constant 0 : index
    %32 = vector.load %arg14[%c0_22, %c0_23] : memref<1x128xf32, #tpu.memory_space<vmem>>, vector<1x128xf32>
    tpu.vector_store %arg14[%c0_22, %c0_23], %31 {strides = array<i32>} : memref<1x128xf32, #tpu.memory_space<vmem>>, vector<1x128xf32>,
    %c0_24 = arith.constant 0 : index
    %c0_25 = arith.constant 0 : index
    %33 = vector.load %arg15[%c0_24, %c0_25] : memref<32x128xf32, #tpu.memory_space<vmem>>, vector<32x128xf32>
    %34 = vector.broadcast %23 : vector<1x128xf32> to vector<32x128xf32>
    %35 = arith.mulf %34, %33 : vector<32x128xf32>
    %cst_26 = arith.constant dense<0.000000e+00> : vector<32x128xf32>
    %36 = tpu.matmul %15, %26, %cst_26 {dimension_numbers = #tpu.dot_dimension_numbers<[1], [0], [0], [1], [0, 0, 1, 1], [], []>} : vector<32x128xf32>, vector<128x128xf32>, vector<32x128xf32> -> vector<32x128xf32>
    %37 = arith.addf %35, %36 : vector<32x128xf32>
    %c0_27 = arith.constant 0 : index
    %c0_28 = arith.constant 0 : index
    %38 = vector.load %arg15[%c0_27, %c0_28] : memref<32x128xf32, #tpu.memory_space<vmem>>, vector<32x128xf32>
    tpu.vector_store %arg15[%c0_27, %c0_28], %37 {strides = array<i32>} : memref<32x128xf32, #tpu.memory_space<vmem>>, vector<32x128xf32>,
    %c0_29 = arith.constant 0 : index
    %c0_30 = arith.constant 0 : index
    %39 = vector.load %arg13[%c0_29, %c0_30] : memref<1x128xf32, #tpu.memory_space<vmem>>, vector<1x128xf32>
    tpu.vector_store %arg13[%c0_29, %c0_30], %21 {strides = array<i32>} : memref<1x128xf32, #tpu.memory_space<vmem>>, vector<1x128xf32>,
    %c1_i32 = arith.constant 1 : i32
    %40 = arith.cmpi eq, %arg3, %c1_i32 : i32
    %41 = arith.extui %40 : i1 to i32
    %c0_i32_31 = arith.constant 0 : i32
    %42 = arith.cmpi ne, %41, %c0_i32_31 : i32
    scf.if %42 {
      %c0_34 = arith.constant 0 : index
      %c0_35 = arith.constant 0 : index
      %48 = vector.load %arg15[%c0_34, %c0_35] : memref<32x128xf32, #tpu.memory_space<vmem>>, vector<32x128xf32>
      %c0_36 = arith.constant 0 : index
      %c0_37 = arith.constant 0 : index
      %49 = vector.load %arg14[%c0_36, %c0_37] : memref<1x128xf32, #tpu.memory_space<vmem>>, vector<1x128xf32>
      %cst_38 = arith.constant 1.000000e+00 : f32
      %50 = vector.broadcast %cst_38 : f32 to vector<1x128xf32>
      %51 = arith.divf %50, %49 : vector<1x128xf32>
      %52 = vector.broadcast %51 : vector<1x128xf32> to vector<32x128xf32>
      %53 = arith.mulf %48, %52 : vector<32x128xf32>
      %c0_39 = arith.constant 0 : index
      %c0_40 = arith.constant 0 : index
      %54 = vector.load %arg16[%c0_39, %c0_40] : memref<4x128xf32, #tpu.memory_space<vmem>>, vector<4x128xf32>
      %c0_41 = arith.constant 0 : index
      %c0_42 = arith.constant 0 : index
      %c0_43 = arith.constant 0 : index
      %55 = vector.load %arg9[%c0_41, %c0_42, %c0_43] : memref<1x4x32xf32, #tpu.memory_space<vmem>>, vector<1x4x32xf32>
      %56 = vector.shape_cast %55 : vector<1x4x32xf32> to vector<4x32xf32>
      %cst_44 = arith.constant dense<0.000000e+00> : vector<4x128xf32>
      %57 = tpu.matmul %56, %53, %cst_44 {dimension_numbers = #tpu.dot_dimension_numbers<[1], [0], [0], [1], [0, 0, 1, 1], [], []>} : vector<4x32xf32>, vector<32x128xf32>, vector<4x128xf32> -> vector<4x128xf32>
      %58 = arith.addf %54, %57 : vector<4x128xf32>
      %c0_45 = arith.constant 0 : index
      %c0_46 = arith.constant 0 : index
      %59 = vector.load %arg16[%c0_45, %c0_46] : memref<4x128xf32, #tpu.memory_space<vmem>>, vector<4x128xf32>
      tpu.vector_store %arg16[%c0_45, %c0_46], %58 {strides = array<i32>} : memref<4x128xf32, #tpu.memory_space<vmem>>, vector<4x128xf32>,
    } else {
    }
    %c3_i32 = arith.constant 3 : i32
    %43 = arith.cmpi eq, %arg2, %c3_i32 : i32
    %c1_i32_32 = arith.constant 1 : i32
    %44 = arith.cmpi eq, %arg3, %c1_i32_32 : i32
    %45 = arith.andi %43, %44 : i1
    %46 = arith.extui %45 : i1 to i32
    %c0_i32_33 = arith.constant 0 : i32
    %47 = arith.cmpi ne, %46, %c0_i32_33 : i32
    scf.if %47 {
      %c0_34 = arith.constant 0 : index
      %c0_35 = arith.constant 0 : index
      %48 = vector.load %arg16[%c0_34, %c0_35] : memref<4x128xf32, #tpu.memory_space<vmem>>, vector<4x128xf32>
      %c0_36 = arith.constant 0 : index
      %c0_37 = arith.constant 0 : index
      %c0_38 = arith.constant 0 : index
      %49 = vector.load %arg11[%c0_36, %c0_37, %c0_38] : memref<1x4x128xf32, #tpu.memory_space<vmem>>, vector<1x4x128xf32>
      %50 = vector.shape_cast %49 : vector<1x4x128xf32> to vector<4x128xf32>
      %51 = vector.shape_cast %48 : vector<4x128xf32> to vector<1x4x128xf32>
      tpu.vector_store %arg11[%c0_36, %c0_37, %c0_38], %51 {strides = array<i32>} : memref<1x4x128xf32, #tpu.memory_space<vmem>>, vector<1x4x128xf32>,
    } else {
    }
    return
  }
  func.func @transform_0(%arg0: i32, %arg1: i32, %arg2: i32, %arg3: i32) -> (i32, i32, i32) {
    %c0_i32 = arith.constant 0 : i32
    %c0_i32_0 = arith.constant 0 : i32
    return %arg0, %c0_i32, %arg1 : i32, i32, i32
  }
  func.func @transform_1(%arg0: i32, %arg1: i32, %arg2: i32, %arg3: i32) -> (i32, i32, i32) {
    %c0_i32 = arith.constant 0 : i32
    %c0_i32_0 = arith.constant 0 : i32
    return %arg0, %c0_i32, %arg3 : i32, i32, i32
  }
  func.func @transform_2(%arg0: i32, %arg1: i32, %arg2: i32, %arg3: i32) -> (i32, i32, i32) {
    %c0_i32 = arith.constant 0 : i32
    %c0_i32_0 = arith.constant 0 : i32
    %c0_i32_1 = arith.constant 0 : i32
    return %arg2, %c0_i32, %c0_i32_0 : i32, i32, i32
  }
  func.func @transform_3(%arg0: i32, %arg1: i32, %arg2: i32, %arg3: i32) -> (i32, i32, i32) {
    %c4_i32 = arith.constant 4 : i32
    %0 = arith.addi %c4_i32, %arg2 : i32
    %c0_i32 = arith.constant 0 : i32
    %c0_i32_0 = arith.constant 0 : i32
    %c0_i32_1 = arith.constant 0 : i32
    return %0, %c0_i32, %c0_i32_0 : i32, i32, i32
  }
  func.func @transform_4(%arg0: i32, %arg1: i32, %arg2: i32, %arg3: i32) -> (i32, i32, i32) {
    %c8_i32 = arith.constant 8 : i32
    %0 = arith.addi %c8_i32, %arg2 : i32
    %c0_i32 = arith.constant 0 : i32
    %c0_i32_0 = arith.constant 0 : i32
    %c0_i32_1 = arith.constant 0 : i32
    return %0, %c0_i32, %c0_i32_0 : i32, i32, i32
  }
  func.func @transform_5(%arg0: i32, %arg1: i32, %arg2: i32, %arg3: i32) -> (i32, i32, i32) {
    %c0_i32 = arith.constant 0 : i32
    %c0_i32_0 = arith.constant 0 : i32
    %c0_i32_1 = arith.constant 0 : i32
    return %arg2, %c0_i32, %c0_i32_0 : i32, i32, i32
  }
  func.func @transform_6(%arg0: i32, %arg1: i32, %arg2: i32, %arg3: i32) -> (i32, i32) {
    %c0_i32 = arith.constant 0 : i32
    %c0_i32_0 = arith.constant 0 : i32
    %c0_i32_1 = arith.constant 0 : i32
    return %c0_i32, %c0_i32_0 : i32, i32
  }
  func.func @transform_7(%arg0: i32, %arg1: i32, %arg2: i32, %arg3: i32) -> (i32, i32, i32) {
    %c0_i32 = arith.constant 0 : i32
    %c0_i32_0 = arith.constant 0 : i32
    return %arg0, %c0_i32, %arg1 : i32, i32, i32
  }
}

</mosaic_0001>

<llo_original>
// kernel: tpu_custom_call.1
$region0: #{tpu_custom_call.1}
  #allocation0 [shape = 'u32[]', space=smem, size = 0x4, offset = 0x4, fixed_abs, tag = 'smem constant byte address 0x4 - core index']
  #allocation1 [shape = 'u32[144,128]{1,0:T(1,128)}', space=vmem, size = 0x12000, scoped, tag = 'internal scratch']
  #allocation2 [shape = 'f32[32,128]{1,0:T(8,128)}', space=vmem, size = 0x4000, scoped, tag = 'scratch operand']
  #allocation3 [shape = 'f32[1,128]{1,0:T(1,128)}', space=vmem, size = 0x200, scoped, tag = 'scratch operand']
  #allocation4 [shape = 'f32[1,128]{1,0:T(1,128)}', space=vmem, size = 0x200, scoped, tag = 'scratch operand']
  #allocation5 [shape = 'f32[32,128]{1,0:T(8,128)}', space=vmem, size = 0x4000, scoped, tag = 'scratch operand']
  #allocation6 [shape = 'f32[4,128]{1,0:T(4,128)}', space=vmem, size = 0x800, scoped, tag = 'scratch operand']
  %s0 = inlined_call_operand.vmem [shape: f32[2,4,256], index: 0, kind: input, shape index: {}]
  %s1 = inlined_call_operand.vmem [shape: f32[2,4,256], index: 1, kind: input, shape index: {}]
  %s2 = inlined_call_operand.vmem [shape: f32[12,32,4], index: 2, kind: input, shape index: {}]
  %s3 = inlined_call_operand.vmem [shape: f32[12,32,4], index: 3, kind: input, shape index: {}]
  %s4 = inlined_call_operand.vmem [shape: f32[12,32,4], index: 4, kind: input, shape index: {}]
  %s5 = inlined_call_operand.vmem [shape: f32[4,4,32], index: 5, kind: input, shape index: {}]
  %s6 = inlined_call_operand.vmem [shape: f32[4,1], index: 6, kind: input, shape index: {}]
  %s7 = inlined_call_operand.hbm [shape: f32[2,4,256], index: 7, kind: output, shape index: {}]
  %s8 = sld [smem:[#allocation0]]
  $region77: #{tpu_custom_call.1} parent=0
    _
  %s10 = ssub.s32 1, %s8
  %s11 = scalar_select 0, %s10, %s8
  $region1: #{tpu_custom_call.1} parent=0
    #allocation7 [shape = 'u8[4096]{0}', space=vmem, size = 0x1000, scoped, tag = 'output window, operand 0']
    #allocation8 [shape = 's32[2]{0}', space=sflag, size = 0x8, scoped, tag = 'scoped memory for tpu_custom_call.1']
    %12 = vsyncpa [#allocation8], 0
    %s13 = scalar_lea.sflag [#allocation8], 1
    %14 = vsyncpa %s13, 0
    loop: start=0, step=1, limit=34
    $region2: #{tpu_custom_call.1} parent=1 // loop_pre_header
      _
    $region3: #{tpu_custom_call.1} parent=1 // loop_header
      %s16 = sphi 0, %s20
      %p17 = scmp.ge.s32.totalorder %s16, 34
      %s23 = sphi 0, %s49
      %s24 = sphi 0, %s45
      %s25 = sphi 0, %s41
      %s26 = sphi 0, %s37
      %s27 = sphi 0, %s23
      %s28 = sphi 0, %s24
      %s29 = sphi 0, %s25
      %s30 = sphi 0, %s26
      %s31 = sphi 0, %s27
      %s32 = sphi 0, %s28
      %s33 = sphi 0, %s29
      %s34 = sphi 0, %s30
      %s54 = sphi 0, %s56
      %s57 = sphi 0, %s54
      %s58 = sphi 0, %s57
      %s74 = sphi 0, %s58
      %s82 = sphi 0, %s84
      %s85 = sphi 0, %s82
      %s86 = sphi 0, %s85
      %s102 = sphi 0, %s86
      %s108 = sphi 0, %s110
      %s111 = sphi 0, %s108
      %s112 = sphi 0, %s111
      %s128 = sphi 0, %s112
      %s136 = sphi 0, %s138
      %s139 = sphi 0, %s136
      %s140 = sphi 0, %s139
      %s156 = sphi 0, %s140
      %s164 = sphi 0, %s166
      %s167 = sphi 0, %s164
      %s168 = sphi 0, %s167
      %s184 = sphi 0, %s168
      %s190 = sphi 0, %s192
      %s193 = sphi 0, %s190
      %s194 = sphi 0, %s193
      %s210 = sphi 0, %s194
      %s214 = sphi 0, %s214
      %s216 = sphi 0, %s214
      %s217 = sphi 0, %s216
      %s231 = sphi 0, %s217
      %s239 = sphi 0, %s241
      %s242 = sphi 0, %s239
      %s243 = sphi 0, %s242
      %s259 = sphi 0, %s243
    $region4: #{tpu_custom_call.1} parent=1 // loop_header_branch
      %19 = sbr.rel (%p17) target = $region8
    $region5: #{tpu_custom_call.1} parent=1 // loop_body
      %s21 = ssub.s32 %s16, 1
      %s22 = ssub.s32 %s16, 2
      %s35 = sadd.s32 1, %s26
      %p36 = scmp.ge.s32.totalorder %s35, 2
      %s37 = scalar_select %p36, 0, %s35
      %s38 = sadd.s32 1, %s25
      %s39 = scalar_select %p36, %s38, %s25
      %p40 = scmp.ge.s32.totalorder %s39, 4
      %s41 = scalar_select %p40, 0, %s39
      %s42 = sadd.s32 1, %s24
      %s43 = scalar_select %p40, %s42, %s24
      %p44 = scmp.ge.s32.totalorder %s43, 2
      %s45 = scalar_select %p44, 0, %s43
      %s46 = sadd.s32 1, %s23
      %s47 = scalar_select %p44, %s46, %s23
      %p48 = scmp.ge.s32.totalorder %s47, 2
      %s49 = scalar_select %p48, 0, %s47
      %s50 = ssub.s32 %s23, %s49
      %s51 = ssub.s32 %s24, %s45
      %s52 = sor.u32 %s50, %s51
      %p53 = scmp.eq.s32.totalorder %s52, 0
      %s55 = sadd.s32 %s54, 1
      %s56 = scalar_select %p53, %s54, %s55
      %p59 = pneg %p53
      %p60 = scmp.eq.s32.totalorder %s16, 31
      %p61 = por %p59, %p60
      %p62 = scmp.ne.s32.totalorder %s54, %s57
      %p63 = scmp.eq.s32.totalorder %s16, 0
      %p64 = por %p62, %p63
      %p65 = scmp.ne.s32.totalorder %s54, %s57
      %p66 = scmp.eq.s32.totalorder %s21, 31
      %p67 = por %p65, %p66
      %p68 = scmp.ne.s32.totalorder %s57, %s58
      %p69 = scmp.eq.s32.totalorder %s21, 0
      %p70 = por %p68, %p69
      %p71 = scmp.ne.s32.totalorder %s57, %s58
      %p72 = scmp.eq.s32.totalorder %s22, 31
      %p73 = por %p71, %p72
      %p75 = scmp.ne.s32.totalorder %s58, %s74
      %p76 = scmp.eq.s32.totalorder %s22, 0
      %p77 = por %p75, %p76
      %s78 = ssub.s32 %s23, %s49
      %s79 = ssub.s32 %s26, %s37
      %s80 = sor.u32 %s78, %s79
      %p81 = scmp.eq.s32.totalorder %s80, 0
      %s83 = sadd.s32 %s82, 1
      %s84 = scalar_select %p81, %s82, %s83
      %p87 = pneg %p81
      %p88 = scmp.eq.s32.totalorder %s16, 31
      %p89 = por %p87, %p88
      %p90 = scmp.ne.s32.totalorder %s82, %s85
      %p91 = scmp.eq.s32.totalorder %s16, 0
      %p92 = por %p90, %p91
      %p93 = scmp.ne.s32.totalorder %s82, %s85
      %p94 = scmp.eq.s32.totalorder %s21, 31
      %p95 = por %p93, %p94
      %p96 = scmp.ne.s32.totalorder %s85, %s86
      %p97 = scmp.eq.s32.totalorder %s21, 0
      %p98 = por %p96, %p97
      %p99 = scmp.ne.s32.totalorder %s85, %s86
      %p100 = scmp.eq.s32.totalorder %s22, 31
      %p101 = por %p99, %p100
      %p103 = scmp.ne.s32.totalorder %s86, %s102
      %p104 = scmp.eq.s32.totalorder %s22, 0
      %p105 = por %p103, %p104
      %s106 = ssub.s32 %s25, %s41
      %p107 = scmp.eq.s32.totalorder %s106, 0
      %s109 = sadd.s32 %s108, 1
      %s110 = scalar_select %p107, %s108, %s109
      %p113 = pneg %p107
      %p114 = scmp.eq.s32.totalorder %s16, 31
      %p115 = por %p113, %p114
      %p116 = scmp.ne.s32.totalorder %s108, %s111
      %p117 = scmp.eq.s32.totalorder %s16, 0
      %p118 = por %p116, %p117
      %p119 = scmp.ne.s32.totalorder %s108, %s111
      %p120 = scmp.eq.s32.totalorder %s21, 31
      %p121 = por %p119, %p120
      %p122 = scmp.ne.s32.totalorder %s111, %s112
      %p123 = scmp.eq.s32.totalorder %s21, 0
      %p124 = por %p122, %p123
      %p125 = scmp.ne.s32.totalorder %s111, %s112
      %p126 = scmp.eq.s32.totalorder %s22, 31
      %p127 = por %p125, %p126
      %p129 = scmp.ne.s32.totalorder %s112, %s128
      %p130 = scmp.eq.s32.totalorder %s22, 0
      %p131 = por %p129, %p130
      %s132 = sadd.s32 %s25, 4
      %s133 = sadd.s32 %s41, 4
      %s134 = ssub.s32 %s132, %s133
      %p135 = scmp.eq.s32.totalorder %s134, 0
      %s137 = sadd.s32 %s136, 1
      %s138 = scalar_select %p135, %s136, %s137
      %p141 = pneg %p135
      %p142 = scmp.eq.s32.totalorder %s16, 31
      %p143 = por %p141, %p142
      %p144 = scmp.ne.s32.totalorder %s136, %s139
      %p145 = scmp.eq.s32.totalorder %s16, 0
      %p146 = por %p144, %p145
      %p147 = scmp.ne.s32.totalorder %s136, %s139
      %p148 = scmp.eq.s32.totalorder %s21, 31
      %p149 = por %p147, %p148
      %p150 = scmp.ne.s32.totalorder %s139, %s140
      %p151 = scmp.eq.s32.totalorder %s21, 0
      %p152 = por %p150, %p151
      %p153 = scmp.ne.s32.totalorder %s139, %s140
      %p154 = scmp.eq.s32.totalorder %s22, 31
      %p155 = por %p153, %p154
      %p157 = scmp.ne.s32.totalorder %s140, %s156
      %p158 = scmp.eq.s32.totalorder %s22, 0
      %p159 = por %p157, %p158
      %s160 = sadd.s32 %s25, 8
      %s161 = sadd.s32 %s41, 8
      %s162 = ssub.s32 %s160, %s161
      %p163 = scmp.eq.s32.totalorder %s162, 0
      %s165 = sadd.s32 %s164, 1
      %s166 = scalar_select %p163, %s164, %s165
      %p169 = pneg %p163
      %p170 = scmp.eq.s32.totalorder %s16, 31
      %p171 = por %p169, %p170
      %p172 = scmp.ne.s32.totalorder %s164, %s167
      %p173 = scmp.eq.s32.totalorder %s16, 0
      %p174 = por %p172, %p173
      %p175 = scmp.ne.s32.totalorder %s164, %s167
      %p176 = scmp.eq.s32.totalorder %s21, 31
      %p177 = por %p175, %p176
      %p178 = scmp.ne.s32.totalorder %s167, %s168
      %p179 = scmp.eq.s32.totalorder %s21, 0
      %p180 = por %p178, %p179
      %p181 = scmp.ne.s32.totalorder %s167, %s168
      %p182 = scmp.eq.s32.totalorder %s22, 31
      %p183 = por %p181, %p182
      %p185 = scmp.ne.s32.totalorder %s168, %s184
      %p186 = scmp.eq.s32.totalorder %s22, 0
      %p187 = por %p185, %p186
      %s188 = ssub.s32 %s25, %s41
      %p189 = scmp.eq.s32.totalorder %s188, 0
      %s191 = sadd.s32 %s190, 1
      %s192 = scalar_select %p189, %s190, %s191
      %p195 = pneg %p189
      %p196 = scmp.eq.s32.totalorder %s16, 31
      %p197 = por %p195, %p196
      %p198 = scmp.ne.s32.totalorder %s190, %s193
      %p199 = scmp.eq.s32.totalorder %s16, 0
      %p200 = por %p198, %p199
      %p201 = scmp.ne.s32.totalorder %s190, %s193
      %p202 = scmp.eq.s32.totalorder %s21, 31
      %p203 = por %p201, %p202
      %p204 = scmp.ne.s32.totalorder %s193, %s194
      %p205 = scmp.eq.s32.totalorder %s21, 0
      %p206 = por %p204, %p205
      %p207 = scmp.ne.s32.totalorder %s193, %s194
      %p208 = scmp.eq.s32.totalorder %s22, 31
      %p209 = por %p207, %p208
      %p211 = scmp.ne.s32.totalorder %s194, %s210
      %p212 = scmp.eq.s32.totalorder %s22, 0
      %p213 = por %p211, %p212
      %s215 = sadd.s32 %s214, 1
      %p218 = scmp.eq.s32.totalorder %s16, 31
      %p219 = scmp.ne.s32.totalorder %s214, %s216
      %p220 = scmp.eq.s32.totalorder %s16, 0
      %p221 = por %p219, %p220
      %p222 = scmp.ne.s32.totalorder %s214, %s216
      %p223 = scmp.eq.s32.totalorder %s21, 31
      %p224 = por %p222, %p223
      %p225 = scmp.ne.s32.totalorder %s216, %s217
      %p226 = scmp.eq.s32.totalorder %s21, 0
      %p227 = por %p225, %p226
      %p228 = scmp.ne.s32.totalorder %s216, %s217
      %p229 = scmp.eq.s32.totalorder %s22, 31
      %p230 = por %p228, %p229
      %p232 = scmp.ne.s32.totalorder %s217, %s231
      %p233 = scmp.eq.s32.totalorder %s22, 0
      %p234 = por %p232, %p233
      %s235 = ssub.s32 %s23, %s49
      %s236 = ssub.s32 %s24, %s45
      %s237 = sor.u32 %s235, %s236
      %p238 = scmp.eq.s32.totalorder %s237, 0
      %s240 = sadd.s32 %s239, 1
      %s241 = scalar_select %p238, %s239, %s240
      %p244 = pneg %p238
      %p245 = scmp.eq.s32.totalorder %s16, 31
      %p246 = por %p244, %p245
      %p247 = scmp.ne.s32.totalorder %s239, %s242
      %p248 = scmp.eq.s32.totalorder %s16, 0
      %p249 = por %p247, %p248
      %p250 = scmp.ne.s32.totalorder %s239, %s242
      %p251 = scmp.eq.s32.totalorder %s21, 31
      %p252 = por %p250, %p251
      %p253 = scmp.ne.s32.totalorder %s242, %s243
      %p254 = scmp.eq.s32.totalorder %s21, 0
      %p255 = por %p253, %p254
      %p256 = scmp.ne.s32.totalorder %s242, %s243
      %p257 = scmp.eq.s32.totalorder %s22, 31
      %p258 = por %p256, %p257
      %p260 = scmp.ne.s32.totalorder %s243, %s259
      %p261 = scmp.eq.s32.totalorder %s22, 0
      %p262 = por %p260, %p261
      %p263 = scmp.le.s32.totalorder 1, %s16
      %p264 = scmp.lt.s32.totalorder %s16, 33
      %p265 = pnand %p263, %p264
      %p266 = pneg %p265
      // Predicated region
      $region9: #{tpu_custom_call.1} parent=5 // pred_check
        _
      $region10: #{tpu_custom_call.1} parent=5 // pred_check_branch
        %268 = sbr.rel (%p265) target = $region12
      $region11: #{tpu_custom_call.1} parent=5 // pred_region
        %s269 = ssub.s32 %s16, 1
        // Predicated region
        $region13: #{tpu_custom_call.1} parent=11 // pred_check
          %p270 = pneg %p227
        $region14: #{tpu_custom_call.1} parent=11 // pred_check_branch
          %272 = sbr.rel (%p270) target = $region16
        $region15: #{tpu_custom_call.1} parent=11 // pred_region
          _
        $region16: #{tpu_custom_call.1} parent=11 // pred_fallthru
          _
      $region12: #{tpu_custom_call.1} parent=5 // pred_fallthru
        _
      %p273 = scmp.lt.s32.totalorder %s16, 32
      // Predicated region
      $region17: #{tpu_custom_call.1} parent=5 // pred_check
        %p274 = pneg %p273
      $region18: #{tpu_custom_call.1} parent=5 // pred_check_branch
        %276 = sbr.rel (%p274) target = $region20
      $region19: #{tpu_custom_call.1} parent=5 // pred_region
        // Predicated region
        $region21: #{tpu_custom_call.1} parent=19 // pred_check
          %p277 = pneg %p64
        $region22: #{tpu_custom_call.1} parent=19 // pred_check_branch
          %279 = sbr.rel (%p277) target = $region24
        $region23: #{tpu_custom_call.1} parent=19 // pred_region
          %p280 = scmp.lt.s32.totalorder %s23, 1
          %s281 = scalar_select %p280, %s23, 1
          %p282 = scmp.lt.s32.totalorder %s24, 1
          %s283 = scalar_select %p282, %s24, 1
          %s284 = smul.addr %s281, 2
          %s285 = sadd.s32 %s283, %s284
          %s286 = smul.addr %s285, 4
          %s287 = scalar_lea.vmem %s0, %s286
        $region24: #{tpu_custom_call.1} parent=19 // pred_fallthru
          _
        // Predicated region
        $region25: #{tpu_custom_call.1} parent=19 // pred_check
          %p288 = pneg %p92
        $region26: #{tpu_custom_call.1} parent=19 // pred_check_branch
          %290 = sbr.rel (%p288) target = $region28
        $region27: #{tpu_custom_call.1} parent=19 // pred_region
          %p291 = scmp.lt.s32.totalorder %s23, 1
          %s292 = scalar_select %p291, %s23, 1
          %p293 = scmp.lt.s32.totalorder %s26, 1
          %s294 = scalar_select %p293, %s26, 1
          %s295 = smul.addr %s292, 2
          %s296 = sadd.s32 %s294, %s295
          %s297 = smul.addr %s296, 4
          %s298 = scalar_lea.vmem %s1, %s297
        $region28: #{tpu_custom_call.1} parent=19 // pred_fallthru
          _
        // Predicated region
        $region29: #{tpu_custom_call.1} parent=19 // pred_check
          %p299 = pneg %p118
        $region30: #{tpu_custom_call.1} parent=19 // pred_check_branch
          %301 = sbr.rel (%p299) target = $region32
        $region31: #{tpu_custom_call.1} parent=19 // pred_region
          %p302 = scmp.lt.s32.totalorder %s25, 11
          %s303 = scalar_select %p302, %s25, 11
          %s304 = smul.addr %s303, 4
          %s305 = smul.addr %s304, 8
          %s306 = scalar_lea.vmem %s2, %s305
        $region32: #{tpu_custom_call.1} parent=19 // pred_fallthru
          _
        // Predicated region
        $region33: #{tpu_custom_call.1} parent=19 // pred_check
          %p307 = pneg %p146
        $region34: #{tpu_custom_call.1} parent=19 // pred_check_branch
          %309 = sbr.rel (%p307) target = $region36
        $region35: #{tpu_custom_call.1} parent=19 // pred_region
          %s310 = sadd.s32 %s25, 4
          %p311 = scmp.lt.s32.totalorder %s310, 11
          %s312 = scalar_select %p311, %s310, 11
          %s313 = smul.addr %s312, 4
          %s314 = smul.addr %s313, 8
          %s315 = scalar_lea.vmem %s3, %s314
          %s316 = sadd.s32 %s25, 4
        $region36: #{tpu_custom_call.1} parent=19 // pred_fallthru
          _
        // Predicated region
        $region37: #{tpu_custom_call.1} parent=19 // pred_check
          %p317 = pneg %p174
        $region38: #{tpu_custom_call.1} parent=19 // pred_check_branch
          %319 = sbr.rel (%p317) target = $region40
        $region39: #{tpu_custom_call.1} parent=19 // pred_region
          %s320 = sadd.s32 %s25, 8
          %p321 = scmp.lt.s32.totalorder %s320, 11
          %s322 = scalar_select %p321, %s320, 11
          %s323 = smul.addr %s322, 4
          %s324 = smul.addr %s323, 8
          %s325 = scalar_lea.vmem %s4, %s324
          %s326 = sadd.s32 %s25, 8
        $region40: #{tpu_custom_call.1} parent=19 // pred_fallthru
          _
        // Predicated region
        $region41: #{tpu_custom_call.1} parent=19 // pred_check
          %p327 = pneg %p200
        $region42: #{tpu_custom_call.1} parent=19 // pred_check_branch
          %329 = sbr.rel (%p327) target = $region44
        $region43: #{tpu_custom_call.1} parent=19 // pred_region
          %p330 = scmp.lt.s32.totalorder %s25, 3
          %s331 = scalar_select %p330, %s25, 3
          %s332 = smul.addr %s331, 4
          %s333 = scalar_lea.vmem %s5, %s332
        $region44: #{tpu_custom_call.1} parent=19 // pred_fallthru
          _
      $region20: #{tpu_custom_call.1} parent=5 // pred_fallthru
        _
      %p334 = scmp.le.s32.totalorder 1, %s16
      %p335 = scmp.lt.s32.totalorder %s16, 33
      %p336 = pnand %p334, %p335
      %p337 = pneg %p336
      // Predicated region
      $region45: #{tpu_custom_call.1} parent=5 // pred_check
        _
      $region46: #{tpu_custom_call.1} parent=5 // pred_check_branch
        %339 = sbr.rel (%p336) target = $region48
      $region47: #{tpu_custom_call.1} parent=5 // pred_region
        %s340 = ssub.s32 %s16, 1
        %p341 = scmp.lt.s32.totalorder %s27, 1
        %s342 = scalar_select %p341, %s27, 1
        %p343 = scmp.lt.s32.totalorder %s28, 1
        %s344 = scalar_select %p343, %s28, 1
        %s345 = smul.addr %s342, 2
        %s346 = sadd.s32 %s344, %s345
        %s347 = smul.addr %s346, 4
        %s348 = scalar_lea.vmem %s0, %s347
        %p349 = pneg %p70
        %p350 = pneg %p67
        %p351 = scmp.lt.s32.totalorder %s27, 1
        %s352 = scalar_select %p351, %s27, 1
        %p353 = scmp.lt.s32.totalorder %s30, 1
        %s354 = scalar_select %p353, %s30, 1
        %s355 = smul.addr %s352, 2
        %s356 = sadd.s32 %s354, %s355
        %s357 = smul.addr %s356, 4
        %s358 = scalar_lea.vmem %s1, %s357
        %p359 = pneg %p98
        %p360 = pneg %p95
        %p361 = scmp.lt.s32.totalorder %s29, 11
        %s362 = scalar_select %p361, %s29, 11
        %s363 = smul.addr %s362, 4
        %s364 = smul.addr %s363, 8
        %s365 = scalar_lea.vmem %s2, %s364
        %p366 = pneg %p124
        %p367 = pneg %p121
        %s368 = sadd.s32 %s29, 4
        %p369 = scmp.lt.s32.totalorder %s368, 11
        %s370 = scalar_select %p369, %s368, 11
        %s371 = smul.addr %s370, 4
        %s372 = smul.addr %s371, 8
        %s373 = scalar_lea.vmem %s3, %s372
        %p374 = pneg %p152
        %p375 = pneg %p149
        %s376 = sadd.s32 %s29, 8
        %p377 = scmp.lt.s32.totalorder %s376, 11
        %s378 = scalar_select %p377, %s376, 11
        %s379 = smul.addr %s378, 4
        %s380 = smul.addr %s379, 8
        %s381 = scalar_lea.vmem %s4, %s380
        %p382 = pneg %p180
        %p383 = pneg %p177
        %p384 = scmp.lt.s32.totalorder %s29, 3
        %s385 = scalar_select %p384, %s29, 3
        %s386 = smul.addr %s385, 4
        %s387 = scalar_lea.vmem %s5, %s386
        %p388 = pneg %p206
        %p389 = pneg %p203
        %p390 = pneg %p227
        %p391 = pneg %p224
        %p392 = pneg %p255
        %p393 = pneg %p252
        %s394 = sand.u32 %s242, 1
        %s395 = scalar_lea.sflag [#allocation8], %s394
        %s396 = sand.u32 %s242, 1
        %s397 = smul.addr %s396, 4
        %s398 = scalar_lea.vmem [#allocation7], %s397
        %p399 = scmp.lt.s32.totalorder %s27, 1
        %s400 = scalar_select %p399, %s27, 1
        %p401 = scmp.lt.s32.totalorder %s28, 1
        %s402 = scalar_select %p401, %s28, 1
        %s403 = smul.addr %s400, 2
        %s404 = sadd.s32 %s402, %s403
        %s405 = smul.addr %s404, 4
        %s406 = scalar_lea.vmem %s0, %s405
        %p407 = scmp.lt.s32.totalorder %s27, 1
        %s408 = scalar_select %p407, %s27, 1
        %p409 = scmp.lt.s32.totalorder %s30, 1
        %s410 = scalar_select %p409, %s30, 1
        %s411 = smul.addr %s408, 2
        %s412 = sadd.s32 %s410, %s411
        %s413 = smul.addr %s412, 4
        %s414 = scalar_lea.vmem %s1, %s413
        %p415 = scmp.lt.s32.totalorder %s29, 11
        %s416 = scalar_select %p415, %s29, 11
        %s417 = smul.addr %s416, 4
        %s418 = smul.addr %s417, 8
        %s419 = scalar_lea.vmem %s2, %s418
        %s420 = sadd.s32 %s29, 4
        %p421 = scmp.lt.s32.totalorder %s420, 11
        %s422 = scalar_select %p421, %s420, 11
        %s423 = smul.addr %s422, 4
        %s424 = smul.addr %s423, 8
        %s425 = scalar_lea.vmem %s3, %s424
        %s426 = sadd.s32 %s29, 4
        %s427 = sadd.s32 %s29, 8
        %p428 = scmp.lt.s32.totalorder %s427, 11
        %s429 = scalar_select %p428, %s427, 11
        %s430 = smul.addr %s429, 4
        %s431 = smul.addr %s430, 8
        %s432 = scalar_lea.vmem %s4, %s431
        %s433 = sadd.s32 %s29, 8
        %p434 = scmp.lt.s32.totalorder %s29, 3
        %s435 = scalar_select %p434, %s29, 3
        %s436 = smul.addr %s435, 4
        %s437 = scalar_lea.vmem %s5, %s436
        %p438 = scmp.eq.s32.totalorder %s29, 0
        %p439 = scmp.eq.s32.totalorder %s30, 0
        %p440 = pnand %p438, %p439
        %p441 = pneg %p440
        // Predicated region
        $region49: #{tpu_custom_call.1} parent=47 // pred_check
          _
        $region50: #{tpu_custom_call.1} parent=47 // pred_check_branch
          %443 = sbr.rel (%p440) target = $region52
        $region51: #{tpu_custom_call.1} parent=47 // pred_region
          %v444 = vld [vmem:[%s6] sm:$0xf]
          %446 = vset.pattern.permute.xlu0 0
          %447 = vperm.xlu0 %446, %v444
          %v448 = vpop.permute.xlu0 %447
          %450 = vst [vmem:[#allocation6] sm:$0xf] %v448
        $region52: #{tpu_custom_call.1} parent=47 // pred_fallthru
          _
        // Predicated region
        $region53: #{tpu_custom_call.1} parent=47 // pred_check
          %p451 = pneg %p439
        $region54: #{tpu_custom_call.1} parent=47 // pred_check_branch
          %453 = sbr.rel (%p451) target = $region56
        $region55: #{tpu_custom_call.1} parent=47 // pred_region
          %v454 = vld [vmem:[%s419] sm:$0xff]
          %v455 = vld [vmem:[%s419 + $0x8] sm:$0xff]
          %v456 = vld [vmem:[%s419 + $0x10] sm:$0xff]
          %v457 = vld [vmem:[%s419 + $0x18] sm:$0xff]
          %v458 = vld [vmem:[%s406] sm:$0xf]
          %vm459 = vcmask 31744
          %v461 = vsel %vm459, %v454, 0
          %v464 = vsel %vm459, %v455, 0
          %v467 = vsel %vm459, %v456, 0
          %v470 = vsel %vm459, %v457, 0
          %vm472 = vcmask 1043456
          %v474 = vsel %vm472, %v458, 0
          %476 = vmatprep.subr.mxu0 0.0
          %477 = vmatpush1.msra.mxu0 %v474
          %478 = vmatprep.subr.mxu0 0.0
          %479 = vmatpush1.msra.mxu0 0.0
          %480 = vmatprep.subr.mxu0 0.0
          %481 = vmatpush1.msra.mxu0 0.0
          %482 = vmatprep.subr.mxu0 0.0
          %483 = vmatpush1.msra.mxu0 0.0
          %484 = vmatprep.subr.mxu0 0.0
          %485 = vmatpush1.msra.mxu0 0.0
          %486 = vmatprep.subr.mxu0 0.0
          %487 = vmatpush1.msra.mxu0 0.0
          %488 = vmatprep.subr.mxu0 0.0
          %489 = vmatpush1.msra.mxu0 0.0
          %490 = vmatprep.subr.mxu0 0.0
          %491 = vmatpush1.msra.mxu0 0.0
          %492 = vmatprep.subr.mxu0 0.0
          %493 = vmatpush1.msra.mxu0 0.0
          %494 = vmatprep.subr.mxu0 0.0
          %495 = vmatpush1.msra.mxu0 0.0
          %496 = vmatprep.subr.mxu0 0.0
          %497 = vmatpush1.msra.mxu0 0.0
          %498 = vmatprep.subr.mxu0 0.0
          %499 = vmatpush1.msra.mxu0 0.0
          %500 = vmatprep.subr.mxu0 0.0
          %501 = vmatpush1.msra.mxu0 0.0
          %502 = vmatprep.subr.mxu0 0.0
          %503 = vmatpush1.msra.mxu0 0.0
          %504 = vmatprep.subr.mxu0 0.0
          %505 = vmatpush1.msra.mxu0 0.0
          %506 = vmatprep.subr.mxu0 0.0
          %507 = vmatpush1.msra.mxu0 0.0
          %508 = vmatprep.subr.mxu0 0.0
          %509 = vmatpush1.msra.mxu0 0.0
          %510 = vmatprep.subr.mxu0 0.0
          %511 = vmatpush1.msra.mxu0 0.0
          %512 = vmatprep.subr.mxu0 0.0
          %513 = vmatpush1.msra.mxu0 0.0
          %514 = vmatprep.subr.mxu0 0.0
          %515 = vmatpush1.msra.mxu0 0.0
          %516 = vmatprep.subr.mxu0 0.0
          %517 = vmatpush1.msra.mxu0 0.0
          %518 = vmatprep.subr.mxu0 0.0
          %519 = vmatpush1.msra.mxu0 0.0
          %520 = vmatprep.subr.mxu0 0.0
          %521 = vmatpush1.msra.mxu0 0.0
          %522 = vmatprep.subr.mxu0 0.0
          %523 = vmatpush1.msra.mxu0 0.0
          %524 = vmatprep.subr.mxu0 0.0
          %525 = vmatpush1.msra.mxu0 0.0
          %526 = vmatprep.subr.mxu0 0.0
          %527 = vmatpush1.msra.mxu0 0.0
          %528 = vmatprep.subr.mxu0 0.0
          %529 = vmatpush1.msra.mxu0 0.0
          %530 = vmatprep.subr.mxu0 0.0
          %531 = vmatpush1.msra.mxu0 0.0
          %532 = vmatprep.subr.mxu0 0.0
          %533 = vmatpush1.msra.mxu0 0.0
          %534 = vmatprep.subr.mxu0 0.0
          %535 = vmatpush1.msra.mxu0 0.0
          %536 = vmatprep.subr.mxu0 0.0
          %537 = vmatpush1.msra.mxu0 0.0
          %538 = vmatprep.subr.mxu0 0.0
          %539 = vmatpush1.msra.mxu0 0.0
          %540 = vmatprep.mubr.f32.mxu0 0.0
          %541 = vmatmul.mubr.f32.gmra.mrb[0].mxu0 %v461
          %v542 = vpop.f32.mrb[0].mxu0
          %v543 = vadd.f32 0.0, %v542
          %v544 = vpop.f32.mrb[0].mxu0
          %545 = vmatprep.mubr.f32.mxu0 0.0
          %546 = vmatmul.mubr.f32.gmra.mrb[0].mxu0 %v464
          %v547 = vpop.f32.mrb[0].mxu0
          %v548 = vadd.f32 0.0, %v547
          %v549 = vpop.f32.mrb[0].mxu0
          %550 = vmatprep.mubr.f32.mxu0 0.0
          %551 = vmatmul.mubr.f32.gmra.mrb[0].mxu0 %v467
          %v552 = vpop.f32.mrb[0].mxu0
          %v553 = vadd.f32 0.0, %v552
          %v554 = vpop.f32.mrb[0].mxu0
          %555 = vmatprep.mubr.f32.mxu0 0.0
          %556 = vmatmul.mubr.f32.gmra.mrb[0].mxu0 %v470
          %v557 = vpop.f32.mrb[0].mxu0
          %v558 = vadd.f32 0.0, %v557
          %v559 = vpop.f32.mrb[0].mxu0
          %560 = vdwg.mxu0
          %561 = vst [vmem:[#allocation2] sm:$0xff] %v543
          %562 = vst [vmem:[#allocation2 + $0x8] sm:$0xff] %v548
          %563 = vst [vmem:[#allocation2 + $0x10] sm:$0xff] %v553
          %564 = vst [vmem:[#allocation2 + $0x18] sm:$0xff] %v558
          %565 = vst [vmem:[#allocation3] sm:$0x1] -inf
          %566 = vst [vmem:[#allocation4] sm:$0x1] 0.0
          %567 = vst [vmem:[#allocation5] sm:$0xff] 0.0
          %568 = vst [vmem:[#allocation5 + $0x8] sm:$0xff] 0.0
          %569 = vst [vmem:[#allocation5 + $0x10] sm:$0xff] 0.0
          %570 = vst [vmem:[#allocation5 + $0x18] sm:$0xff] 0.0
        $region56: #{tpu_custom_call.1} parent=47 // pred_fallthru
          _
        %v571 = vld [vmem:[%s414] sm:$0xf]
        %v572 = vld [vmem:[%s425] sm:$0xff]
        %v573 = vld [vmem:[%s425 + $0x8] sm:$0xff]
        %v574 = vld [vmem:[%s425 + $0x10] sm:$0xff]
        %v575 = vld [vmem:[%s425 + $0x18] sm:$0xff]
        %vm576 = vcmask 31744
        %v578 = vsel %vm576, %v572, 0
        %v581 = vsel %vm576, %v573, 0
        %v584 = vsel %vm576, %v574, 0
        %v587 = vsel %vm576, %v575, 0
        %vm589 = vcmask 1043456
        %v591 = vsel %vm589, %v571, 0
        %593 = vmatprep.subr.mxu0 0.0
        %594 = vmatpush1.msra.mxu0 %v591
        %595 = vmatprep.subr.mxu0 0.0
        %596 = vmatpush1.msra.mxu0 0.0
        %597 = vmatprep.subr.mxu0 0.0
        %598 = vmatpush1.msra.mxu0 0.0
        %599 = vmatprep.subr.mxu0 0.0
        %600 = vmatpush1.msra.mxu0 0.0
        %601 = vmatprep.subr.mxu0 0.0
        %602 = vmatpush1.msra.mxu0 0.0
        %603 = vmatprep.subr.mxu0 0.0
        %604 = vmatpush1.msra.mxu0 0.0
        %605 = vmatprep.subr.mxu0 0.0
        %606 = vmatpush1.msra.mxu0 0.0
        %607 = vmatprep.subr.mxu0 0.0
        %608 = vmatpush1.msra.mxu0 0.0
        %609 = vmatprep.subr.mxu0 0.0
        %610 = vmatpush1.msra.mxu0 0.0
        %611 = vmatprep.subr.mxu0 0.0
        %612 = vmatpush1.msra.mxu0 0.0
        %613 = vmatprep.subr.mxu0 0.0
        %614 = vmatpush1.msra.mxu0 0.0
        %615 = vmatprep.subr.mxu0 0.0
        %616 = vmatpush1.msra.mxu0 0.0
        %617 = vmatprep.subr.mxu0 0.0
        %618 = vmatpush1.msra.mxu0 0.0
        %619 = vmatprep.subr.mxu0 0.0
        %620 = vmatpush1.msra.mxu0 0.0
        %621 = vmatprep.subr.mxu0 0.0
        %622 = vmatpush1.msra.mxu0 0.0
        %623 = vmatprep.subr.mxu0 0.0
        %624 = vmatpush1.msra.mxu0 0.0
        %625 = vmatprep.subr.mxu0 0.0
        %626 = vmatpush1.msra.mxu0 0.0
        %627 = vmatprep.subr.mxu0 0.0
        %628 = vmatpush1.msra.mxu0 0.0
        %629 = vmatprep.subr.mxu0 0.0
        %630 = vmatpush1.msra.mxu0 0.0
        %631 = vmatprep.subr.mxu0 0.0
        %632 = vmatpush1.msra.mxu0 0.0
        %633 = vmatprep.subr.mxu0 0.0
        %634 = vmatpush1.msra.mxu0 0.0
        %635 = vmatprep.subr.mxu0 0.0
        %636 = vmatpush1.msra.mxu0 0.0
        %637 = vmatprep.subr.mxu0 0.0
        %638 = vmatpush1.msra.mxu0 0.0
        %639 = vmatprep.subr.mxu0 0.0
        %640 = vmatpush1.msra.mxu0 0.0
        %641 = vmatprep.subr.mxu0 0.0
        %642 = vmatpush1.msra.mxu0 0.0
        %643 = vmatprep.subr.mxu0 0.0
        %644 = vmatpush1.msra.mxu0 0.0
        %645 = vmatprep.subr.mxu0 0.0
        %646 = vmatpush1.msra.mxu0 0.0
        %647 = vmatprep.subr.mxu0 0.0
        %648 = vmatpush1.msra.mxu0 0.0
        %649 = vmatprep.subr.mxu0 0.0
        %650 = vmatpush1.msra.mxu0 0.0
        %651 = vmatprep.subr.mxu0 0.0
        %652 = vmatpush1.msra.mxu0 0.0
        %653 = vmatprep.subr.mxu0 0.0
        %654 = vmatpush1.msra.mxu0 0.0
        %655 = vmatprep.subr.mxu0 0.0
        %656 = vmatpush1.msra.mxu0 0.0
        %657 = vmatprep.mubr.f32.mxu0 0.0
        %658 = vmatmul.mubr.f32.gmra.mrb[0].mxu0 %v578
        %v659 = vpop.f32.mrb[0].mxu0
        %v660 = vadd.f32 0.0, %v659
        %v661 = vpop.f32.mrb[0].mxu0
        %662 = vmatprep.mubr.f32.mxu0 0.0
        %663 = vmatmul.mubr.f32.gmra.mrb[0].mxu0 %v581
        %v664 = vpop.f32.mrb[0].mxu0
        %v665 = vadd.f32 0.0, %v664
        %v666 = vpop.f32.mrb[0].mxu0
        %667 = vmatprep.mubr.f32.mxu0 0.0
        %668 = vmatmul.mubr.f32.gmra.mrb[0].mxu0 %v584
        %v669 = vpop.f32.mrb[0].mxu0
        %v670 = vadd.f32 0.0, %v669
        %v671 = vpop.f32.mrb[0].mxu0
        %672 = vmatprep.mubr.f32.mxu0 0.0
        %673 = vmatmul.mubr.f32.gmra.mrb[0].mxu0 %v587
        %v674 = vpop.f32.mrb[0].mxu0
        %v675 = vadd.f32 0.0, %v674
        %v676 = vpop.f32.mrb[0].mxu0
        %677 = vdwg.mxu0
        %v678 = vld [vmem:[%s432] sm:$0xff]
        %v679 = vld [vmem:[%s432 + $0x8] sm:$0xff]
        %v680 = vld [vmem:[%s432 + $0x10] sm:$0xff]
        %v681 = vld [vmem:[%s432 + $0x18] sm:$0xff]
        %v683 = vsel %vm576, %v678, 0
        %v686 = vsel %vm576, %v679, 0
        %v689 = vsel %vm576, %v680, 0
        %v692 = vsel %vm576, %v681, 0
        %694 = vmatprep.subr.mxu0 0.0
        %695 = vmatpush1.msra.mxu0 %v591
        %696 = vmatprep.subr.mxu0 0.0
        %697 = vmatpush1.msra.mxu0 0.0
        %698 = vmatprep.subr.mxu0 0.0
        %699 = vmatpush1.msra.mxu0 0.0
        %700 = vmatprep.subr.mxu0 0.0
        %701 = vmatpush1.msra.mxu0 0.0
        %702 = vmatprep.subr.mxu0 0.0
        %703 = vmatpush1.msra.mxu0 0.0
        %704 = vmatprep.subr.mxu0 0.0
        %705 = vmatpush1.msra.mxu0 0.0
        %706 = vmatprep.subr.mxu0 0.0
        %707 = vmatpush1.msra.mxu0 0.0
        %708 = vmatprep.subr.mxu0 0.0
        %709 = vmatpush1.msra.mxu0 0.0
        %710 = vmatprep.subr.mxu0 0.0
        %711 = vmatpush1.msra.mxu0 0.0
        %712 = vmatprep.subr.mxu0 0.0
        %713 = vmatpush1.msra.mxu0 0.0
        %714 = vmatprep.subr.mxu0 0.0
        %715 = vmatpush1.msra.mxu0 0.0
        %716 = vmatprep.subr.mxu0 0.0
        %717 = vmatpush1.msra.mxu0 0.0
        %718 = vmatprep.subr.mxu0 0.0
        %719 = vmatpush1.msra.mxu0 0.0
        %720 = vmatprep.subr.mxu0 0.0
        %721 = vmatpush1.msra.mxu0 0.0
        %722 = vmatprep.subr.mxu0 0.0
        %723 = vmatpush1.msra.mxu0 0.0
        %724 = vmatprep.subr.mxu0 0.0
        %725 = vmatpush1.msra.mxu0 0.0
        %726 = vmatprep.subr.mxu0 0.0
        %727 = vmatpush1.msra.mxu0 0.0
        %728 = vmatprep.subr.mxu0 0.0
        %729 = vmatpush1.msra.mxu0 0.0
        %730 = vmatprep.subr.mxu0 0.0
        %731 = vmatpush1.msra.mxu0 0.0
        %732 = vmatprep.subr.mxu0 0.0
        %733 = vmatpush1.msra.mxu0 0.0
        %734 = vmatprep.subr.mxu0 0.0
        %735 = vmatpush1.msra.mxu0 0.0
        %736 = vmatprep.subr.mxu0 0.0
        %737 = vmatpush1.msra.mxu0 0.0
        %738 = vmatprep.subr.mxu0 0.0
        %739 = vmatpush1.msra.mxu0 0.0
        %740 = vmatprep.subr.mxu0 0.0
        %741 = vmatpush1.msra.mxu0 0.0
        %742 = vmatprep.subr.mxu0 0.0
        %743 = vmatpush1.msra.mxu0 0.0
        %744 = vmatprep.subr.mxu0 0.0
        %745 = vmatpush1.msra.mxu0 0.0
        %746 = vmatprep.subr.mxu0 0.0
        %747 = vmatpush1.msra.mxu0 0.0
        %748 = vmatprep.subr.mxu0 0.0
        %749 = vmatpush1.msra.mxu0 0.0
        %750 = vmatprep.subr.mxu0 0.0
        %751 = vmatpush1.msra.mxu0 0.0
        %752 = vmatprep.subr.mxu0 0.0
        %753 = vmatpush1.msra.mxu0 0.0
        %754 = vmatprep.subr.mxu0 0.0
        %755 = vmatpush1.msra.mxu0 0.0
        %756 = vmatprep.subr.mxu0 0.0
        %757 = vmatpush1.msra.mxu0 0.0
        %758 = vmatprep.mubr.f32.mxu0 0.0
        %759 = vmatmul.mubr.f32.gmra.mrb[0].mxu0 %v683
        %v760 = vpop.f32.mrb[0].mxu0
        %v761 = vadd.f32 0.0, %v760
        %v762 = vpop.f32.mrb[0].mxu0
        %763 = vmatprep.mubr.f32.mxu0 0.0
        %764 = vmatmul.mubr.f32.gmra.mrb[0].mxu0 %v686
        %v765 = vpop.f32.mrb[0].mxu0
        %v766 = vadd.f32 0.0, %v765
        %v767 = vpop.f32.mrb[0].mxu0
        %768 = vmatprep.mubr.f32.mxu0 0.0
        %769 = vmatmul.mubr.f32.gmra.mrb[0].mxu0 %v689
        %v770 = vpop.f32.mrb[0].mxu0
        %v771 = vadd.f32 0.0, %v770
        %v772 = vpop.f32.mrb[0].mxu0
        %773 = vmatprep.mubr.f32.mxu0 0.0
        %774 = vmatmul.mubr.f32.gmra.mrb[0].mxu0 %v692
        %v775 = vpop.f32.mrb[0].mxu0
        %v776 = vadd.f32 0.0, %v775
        %v777 = vpop.f32.mrb[0].mxu0
        %778 = vdwg.mxu0
        %v779 = vld [vmem:[#allocation2] sm:$0xff]
        %v780 = vld [vmem:[#allocation2 + $0x8] sm:$0xff]
        %v781 = vld [vmem:[#allocation2 + $0x10] sm:$0xff]
        %v782 = vld [vmem:[#allocation2 + $0x18] sm:$0xff]
        %783 = vxpose.xlu0.b32.start [1/16] %v660, 128
        %784 = vxpose.xlu0.b32.cont [2/16] %v665, 128
        %785 = vxpose.xlu0.b32.cont [3/16] %v670, 128
        %786 = vxpose.xlu0.b32.cont [4/16] %v675, 128
        %787 = vxpose.xlu0.b32.cont [5/16] 0.0, 128
        %788 = vxpose.xlu0.b32.cont [6/16] 0.0, 128
        %789 = vxpose.xlu0.b32.cont [7/16] 0.0, 128
        %790 = vxpose.xlu0.b32.cont [8/16] 0.0, 128
        %791 = vxpose.xlu0.b32.cont [9/16] 0.0, 128
        %792 = vxpose.xlu0.b32.cont [10/16] 0.0, 128
        %793 = vxpose.xlu0.b32.cont [11/16] 0.0, 128
        %794 = vxpose.xlu0.b32.cont [12/16] 0.0, 128
        %795 = vxpose.xlu0.b32.cont [13/16] 0.0, 128
        %796 = vxpose.xlu0.b32.cont [14/16] 0.0, 128
        %797 = vxpose.xlu0.b32.cont [15/16] 0.0, 128
        %798 = vxpose.xlu0.b32.end [16/16] 0.0, 128
        %v799 = vpop.trf.xlu0
        %v800 = vpop.trf.xlu0
        %v801 = vpop.trf.xlu0
        %v802 = vpop.trf.xlu0
        %v803 = vpop.trf.xlu0
        %v804 = vpop.trf.xlu0
        %v805 = vpop.trf.xlu0
        %v806 = vpop.trf.xlu0
        %v807 = vpop.trf.xlu0
        %v808 = vpop.trf.xlu0
        %v809 = vpop.trf.xlu0
        %v810 = vpop.trf.xlu0
        %v811 = vpop.trf.xlu0
        %v812 = vpop.trf.xlu0
        %v813 = vpop.trf.xlu0
        %v814 = vpop.trf.xlu0
        %vm815 = vcmask 261120
        %v817 = vsel %vm815, %v799, 0
        %v820 = vsel %vm815, %v800, 0
        %v823 = vsel %vm815, %v801, 0
        %v826 = vsel %vm815, %v802, 0
        %v829 = vsel %vm815, %v803, 0
        %v832 = vsel %vm815, %v804, 0
        %v835 = vsel %vm815, %v805, 0
        %v838 = vsel %vm815, %v806, 0
        %v841 = vsel %vm815, %v807, 0
        %v844 = vsel %vm815, %v808, 0
        %v847 = vsel %vm815, %v809, 0
        %v850 = vsel %vm815, %v810, 0
        %v853 = vsel %vm815, %v811, 0
        %v856 = vsel %vm815, %v812, 0
        %v859 = vsel %vm815, %v813, 0
        %v862 = vsel %vm815, %v814, 0
        %864 = vmatprep.subr.mxu0 0.0
        %865 = vmatpush1.msra.mxu0 %v779
        %866 = vmatprep.subr.mxu0 0.0
        %867 = vmatpush1.msra.mxu0 %v780
        %868 = vmatprep.subr.mxu0 0.0
        %869 = vmatpush1.msra.mxu0 %v781
        %870 = vmatprep.subr.mxu0 0.0
        %871 = vmatpush1.msra.mxu0 %v782
        %872 = vmatprep.subr.mxu0 0.0
        %873 = vmatpush1.msra.mxu0 0.0
        %874 = vmatprep.subr.mxu0 0.0
        %875 = vmatpush1.msra.mxu0 0.0
        %876 = vmatprep.subr.mxu0 0.0
        %877 = vmatpush1.msra.mxu0 0.0
        %878 = vmatprep.subr.mxu0 0.0
        %879 = vmatpush1.msra.mxu0 0.0
        %880 = vmatprep.subr.mxu0 0.0
        %881 = vmatpush1.msra.mxu0 0.0
        %882 = vmatprep.subr.mxu0 0.0
        %883 = vmatpush1.msra.mxu0 0.0
        %884 = vmatprep.subr.mxu0 0.0
        %885 = vmatpush1.msra.mxu0 0.0
        %886 = vmatprep.subr.mxu0 0.0
        %887 = vmatpush1.msra.mxu0 0.0
        %888 = vmatprep.subr.mxu0 0.0
        %889 = vmatpush1.msra.mxu0 0.0
        %890 = vmatprep.subr.mxu0 0.0
        %891 = vmatpush1.msra.mxu0 0.0
        %892 = vmatprep.subr.mxu0 0.0
        %893 = vmatpush1.msra.mxu0 0.0
        %894 = vmatprep.subr.mxu0 0.0
        %895 = vmatpush1.msra.mxu0 0.0
        %896 = vmatprep.subr.mxu0 0.0
        %897 = vmatpush1.msra.mxu0 0.0
        %898 = vmatprep.subr.mxu0 0.0
        %899 = vmatpush1.msra.mxu0 0.0
        %900 = vmatprep.subr.mxu0 0.0
        %901 = vmatpush1.msra.mxu0 0.0
        %902 = vmatprep.subr.mxu0 0.0
        %903 = vmatpush1.msra.mxu0 0.0
        %904 = vmatprep.subr.mxu0 0.0
        %905 = vmatpush1.msra.mxu0 0.0
        %906 = vmatprep.subr.mxu0 0.0
        %907 = vmatpush1.msra.mxu0 0.0
        %908 = vmatprep.subr.mxu0 0.0
        %909 = vmatpush1.msra.mxu0 0.0
        %910 = vmatprep.subr.mxu0 0.0
        %911 = vmatpush1.msra.mxu0 0.0
        %912 = vmatprep.subr.mxu0 0.0
        %913 = vmatpush1.msra.mxu0 0.0
        %914 = vmatprep.subr.mxu0 0.0
        %915 = vmatpush1.msra.mxu0 0.0
        %916 = vmatprep.subr.mxu0 0.0
        %917 = vmatpush1.msra.mxu0 0.0
        %918 = vmatprep.subr.mxu0 0.0
        %919 = vmatpush1.msra.mxu0 0.0
        %920 = vmatprep.subr.mxu0 0.0
        %921 = vmatpush1.msra.mxu0 0.0
        %922 = vmatprep.subr.mxu0 0.0
        %923 = vmatpush1.msra.mxu0 0.0
        %924 = vmatprep.subr.mxu0 0.0
        %925 = vmatpush1.msra.mxu0 0.0
        %926 = vmatprep.subr.mxu0 0.0
        %927 = vmatpush1.msra.mxu0 0.0
        %928 = vmatprep.mubr.f32.mxu0 0.0
        %929 = vmatmul.mubr.f32.gmra.mrb[0].mxu0 %v817
        %v930 = vpop.f32.mrb[0].mxu0
        %v931 = vadd.f32 0.0, %v930
        %v932 = vpop.f32.mrb[0].mxu0
        %933 = vmatprep.mubr.f32.mxu0 0.0
        %934 = vmatmul.mubr.f32.gmra.mrb[0].mxu0 %v820
        %v935 = vpop.f32.mrb[0].mxu0
        %v936 = vadd.f32 0.0, %v935
        %v937 = vpop.f32.mrb[0].mxu0
        %938 = vmatprep.mubr.f32.mxu0 0.0
        %939 = vmatmul.mubr.f32.gmra.mrb[0].mxu0 %v823
        %v940 = vpop.f32.mrb[0].mxu0
        %v941 = vadd.f32 0.0, %v940
        %v942 = vpop.f32.mrb[0].mxu0
        %943 = vmatprep.mubr.f32.mxu0 0.0
        %944 = vmatmul.mubr.f32.gmra.mrb[0].mxu0 %v826
        %v945 = vpop.f32.mrb[0].mxu0
        %v946 = vadd.f32 0.0, %v945
        %v947 = vpop.f32.mrb[0].mxu0
        %948 = vmatprep.mubr.f32.mxu0 0.0
        %949 = vmatmul.mubr.f32.gmra.mrb[0].mxu0 %v829
        %v950 = vpop.f32.mrb[0].mxu0
        %v951 = vadd.f32 0.0, %v950
        %v952 = vpop.f32.mrb[0].mxu0
        %953 = vmatprep.mubr.f32.mxu0 0.0
        %954 = vmatmul.mubr.f32.gmra.mrb[0].mxu0 %v832
        %v955 = vpop.f32.mrb[0].mxu0
        %v956 = vadd.f32 0.0, %v955
        %v957 = vpop.f32.mrb[0].mxu0
        %958 = vmatprep.mubr.f32.mxu0 0.0
        %959 = vmatmul.mubr.f32.gmra.mrb[0].mxu0 %v835
        %v960 = vpop.f32.mrb[0].mxu0
        %v961 = vadd.f32 0.0, %v960
        %v962 = vpop.f32.mrb[0].mxu0
        %963 = vmatprep.mubr.f32.mxu0 0.0
        %964 = vmatmul.mubr.f32.gmra.mrb[0].mxu0 %v838
        %v965 = vpop.f32.mrb[0].mxu0
        %v966 = vadd.f32 0.0, %v965
        %v967 = vpop.f32.mrb[0].mxu0
        %968 = vmatprep.mubr.f32.mxu0 0.0
        %969 = vmatmul.mubr.f32.gmra.mrb[0].mxu0 %v841
        %v970 = vpop.f32.mrb[0].mxu0
        %v971 = vadd.f32 0.0, %v970
        %v972 = vpop.f32.mrb[0].mxu0
        %973 = vmatprep.mubr.f32.mxu0 0.0
        %974 = vmatmul.mubr.f32.gmra.mrb[0].mxu0 %v844
        %v975 = vpop.f32.mrb[0].mxu0
        %v976 = vadd.f32 0.0, %v975
        %v977 = vpop.f32.mrb[0].mxu0
        %978 = vmatprep.mubr.f32.mxu0 0.0
        %979 = vmatmul.mubr.f32.gmra.mrb[0].mxu0 %v847
        %v980 = vpop.f32.mrb[0].mxu0
        %v981 = vadd.f32 0.0, %v980
        %v982 = vpop.f32.mrb[0].mxu0
        %983 = vmatprep.mubr.f32.mxu0 0.0
        %984 = vmatmul.mubr.f32.gmra.mrb[0].mxu0 %v850
        %v985 = vpop.f32.mrb[0].mxu0
        %v986 = vadd.f32 0.0, %v985
        %v987 = vpop.f32.mrb[0].mxu0
        %988 = vmatprep.mubr.f32.mxu0 0.0
        %989 = vmatmul.mubr.f32.gmra.mrb[0].mxu0 %v853
        %v990 = vpop.f32.mrb[0].mxu0
        %v991 = vadd.f32 0.0, %v990
        %v992 = vpop.f32.mrb[0].mxu0
        %993 = vmatprep.mubr.f32.mxu0 0.0
        %994 = vmatmul.mubr.f32.gmra.mrb[0].mxu0 %v856
        %v995 = vpop.f32.mrb[0].mxu0
        %v996 = vadd.f32 0.0, %v995
        %v997 = vpop.f32.mrb[0].mxu0
        %998 = vmatprep.mubr.f32.mxu0 0.0
        %999 = vmatmul.mubr.f32.gmra.mrb[0].mxu0 %v859
        %v1000 = vpop.f32.mrb[0].mxu0
        %v1001 = vadd.f32 0.0, %v1000
        %v1002 = vpop.f32.mrb[0].mxu0
        %1003 = vmatprep.mubr.f32.mxu0 0.0
        %1004 = vmatmul.mubr.f32.gmra.mrb[0].mxu0 %v862
        %v1005 = vpop.f32.mrb[0].mxu0
        %v1006 = vadd.f32 0.0, %v1005
        %v1007 = vpop.f32.mrb[0].mxu0
        %1008 = vdwg.mxu0
        %v1009 = vld [vmem:[#allocation3] sm:$0x1]
        %v1010 = vmax.f32 %v931, %v951
        %v1011 = vmax.f32 %v936, %v956
        %v1012 = vmax.f32 %v941, %v961
        %v1013 = vmax.f32 %v946, %v966
        %v1014 = vmax.f32 %v1010, %v971
        %v1015 = vmax.f32 %v1011, %v976
        %v1016 = vmax.f32 %v1012, %v981
        %v1017 = vmax.f32 %v1013, %v986
        %v1018 = vmax.f32 %v1014, %v991
        %v1019 = vmax.f32 %v1015, %v996
        %v1020 = vmax.f32 %v1016, %v1001
        %v1021 = vmax.f32 %v1017, %v1006
        %v1022 = vmax.f32 %v1018, %v1019
        %v1023 = vmax.f32 %v1020, %v1021
        %v1024 = vmax.f32 %v1022, %v1023
        %v1025 = vrot.slane %v1024, 4
        %v1026 = vmax.f32 %v1024, %v1025
        %v1027 = vrot.slane %v1026, 2
        %v1028 = vmax.f32 %v1026, %v1027
        %v1029 = vrot.slane %v1028, 1
        %v1030 = vmax.f32 %v1028, %v1029
        %v1031 = vmax.f32 %v1009, %v1030
        %v1032 = vsub.f32 %v1009, %v1031
        %v1033 = vmul.f32 %v1032, 1.442695
        %v1034 = vpow.pop %v1033
        %v1036 = vlaneseq
        %v1037 = vshrl.u32 %v1036, 7
        %v1038 = vsub.s32 0, %v1037
        %v1039 = vrot.slane %v1031, %v1038
        %v1041 = vsub.f32 %v931, %v1039
        %v1042 = vsub.f32 %v936, %v1039
        %v1043 = vsub.f32 %v941, %v1039
        %v1044 = vsub.f32 %v946, %v1039
        %v1045 = vsub.f32 %v951, %v1039
        %v1046 = vsub.f32 %v956, %v1039
        %v1047 = vsub.f32 %v961, %v1039
        %v1048 = vsub.f32 %v966, %v1039
        %v1049 = vsub.f32 %v971, %v1039
        %v1050 = vsub.f32 %v976, %v1039
        %v1051 = vsub.f32 %v981, %v1039
        %v1052 = vsub.f32 %v986, %v1039
        %v1053 = vsub.f32 %v991, %v1039
        %v1054 = vsub.f32 %v996, %v1039
        %v1055 = vsub.f32 %v1001, %v1039
        %v1056 = vsub.f32 %v1006, %v1039
        %v1057 = vmul.f32 %v1041, 1.442695
        %v1058 = vpow.pop %v1057
        %v1059 = vmul.f32 %v1042, 1.442695
        %v1060 = vpow.pop %v1059
        %v1061 = vmul.f32 %v1043, 1.442695
        %v1062 = vpow.pop %v1061
        %v1063 = vmul.f32 %v1044, 1.442695
        %v1064 = vpow.pop %v1063
        %v1065 = vmul.f32 %v1045, 1.442695
        %v1066 = vpow.pop %v1065
        %v1067 = vmul.f32 %v1046, 1.442695
        %v1068 = vpow.pop %v1067
        %v1069 = vmul.f32 %v1047, 1.442695
        %v1070 = vpow.pop %v1069
        %v1071 = vmul.f32 %v1048, 1.442695
        %v1072 = vpow.pop %v1071
        %v1073 = vmul.f32 %v1049, 1.442695
        %v1074 = vpow.pop %v1073
        %v1075 = vmul.f32 %v1050, 1.442695
        %v1076 = vpow.pop %v1075
        %v1077 = vmul.f32 %v1051, 1.442695
        %v1078 = vpow.pop %v1077
        %v1079 = vmul.f32 %v1052, 1.442695
        %v1080 = vpow.pop %v1079
        %v1081 = vmul.f32 %v1053, 1.442695
        %v1082 = vpow.pop %v1081
        %v1083 = vmul.f32 %v1054, 1.442695
        %v1084 = vpow.pop %v1083
        %v1085 = vmul.f32 %v1055, 1.442695
        %v1086 = vpow.pop %v1085
        %v1087 = vmul.f32 %v1056, 1.442695
        %v1088 = vpow.pop %v1087
        %v1089 = vld [vmem:[#allocation4] sm:$0x1]
        %v1090 = vmul.f32 %v1034, %v1089
        %v1091 = vadd.f32 %v1058, %v1060
        %v1092 = vadd.f32 %v1091, %v1062
        %v1093 = vadd.f32 %v1092, %v1064
        %v1094 = vadd.f32 %v1093, %v1066
        %v1095 = vadd.f32 %v1094, %v1068
        %v1096 = vadd.f32 %v1095, %v1070
        %v1097 = vadd.f32 %v1096, %v1072
        %v1098 = vadd.f32 %v1097, %v1074
        %v1099 = vadd.f32 %v1098, %v1076
        %v1100 = vadd.f32 %v1099, %v1078
        %v1101 = vadd.f32 %v1100, %v1080
        %v1102 = vadd.f32 %v1101, %v1082
        %v1103 = vadd.f32 %v1102, %v1084
        %v1104 = vadd.f32 %v1103, %v1086
        %v1105 = vadd.f32 %v1104, %v1088
        %v1106 = vrot.slane %v1105, 4
        %v1107 = vadd.f32 %v1105, %v1106
        %v1108 = vrot.slane %v1107, 2
        %v1109 = vadd.f32 %v1107, %v1108
        %v1110 = vrot.slane %v1109, 1
        %v1111 = vadd.f32 %v1109, %v1110
        %v1112 = vadd.f32 %v1090, %v1111
        %1113 = vst [vmem:[#allocation4] sm:$0x1] %v1112
        %v1114 = vld [vmem:[#allocation5] sm:$0xff]
        %v1115 = vld [vmem:[#allocation5 + $0x8] sm:$0xff]
        %v1116 = vld [vmem:[#allocation5 + $0x10] sm:$0xff]
        %v1117 = vld [vmem:[#allocation5 + $0x18] sm:$0xff]
        %v1119 = vlaneseq
        %v1120 = vshrl.u32 %v1119, 7
        %v1121 = vsub.s32 0, %v1120
        %v1122 = vrot.slane %v1034, %v1121
        %v1124 = vmul.f32 %v1122, %v1114
        %v1125 = vmul.f32 %v1122, %v1115
        %v1126 = vmul.f32 %v1122, %v1116
        %v1127 = vmul.f32 %v1122, %v1117
        %1128 = vmatprep.subr.mxu0 0.0
        %1129 = vmatpush1.msra.mxu0 %v1058
        %1130 = vmatprep.subr.mxu0 0.0
        %1131 = vmatpush1.msra.mxu0 %v1060
        %1132 = vmatprep.subr.mxu0 0.0
        %1133 = vmatpush1.msra.mxu0 %v1062
        %1134 = vmatprep.subr.mxu0 0.0
        %1135 = vmatpush1.msra.mxu0 %v1064
        %1136 = vmatprep.subr.mxu0 0.0
        %1137 = vmatpush1.msra.mxu0 %v1066
        %1138 = vmatprep.subr.mxu0 0.0
        %1139 = vmatpush1.msra.mxu0 %v1068
        %1140 = vmatprep.subr.mxu0 0.0
        %1141 = vmatpush1.msra.mxu0 %v1070
        %1142 = vmatprep.subr.mxu0 0.0
        %1143 = vmatpush1.msra.mxu0 %v1072
        %1144 = vmatprep.subr.mxu0 0.0
        %1145 = vmatpush1.msra.mxu0 %v1074
        %1146 = vmatprep.subr.mxu0 0.0
        %1147 = vmatpush1.msra.mxu0 %v1076
        %1148 = vmatprep.subr.mxu0 0.0
        %1149 = vmatpush1.msra.mxu0 %v1078
        %1150 = vmatprep.subr.mxu0 0.0
        %1151 = vmatpush1.msra.mxu0 %v1080
        %1152 = vmatprep.subr.mxu0 0.0
        %1153 = vmatpush1.msra.mxu0 %v1082
        %1154 = vmatprep.subr.mxu0 0.0
        %1155 = vmatpush1.msra.mxu0 %v1084
        %1156 = vmatprep.subr.mxu0 0.0
        %1157 = vmatpush1.msra.mxu0 %v1086
        %1158 = vmatprep.subr.mxu0 0.0
        %1159 = vmatpush1.msra.mxu0 %v1088
        %1160 = vmatprep.subr.mxu0 0.0
        %1161 = vmatpush1.msra.mxu0 0.0
        %1162 = vmatprep.subr.mxu0 0.0
        %1163 = vmatpush1.msra.mxu0 0.0
        %1164 = vmatprep.subr.mxu0 0.0
        %1165 = vmatpush1.msra.mxu0 0.0
        %1166 = vmatprep.subr.mxu0 0.0
        %1167 = vmatpush1.msra.mxu0 0.0
        %1168 = vmatprep.subr.mxu0 0.0
        %1169 = vmatpush1.msra.mxu0 0.0
        %1170 = vmatprep.subr.mxu0 0.0
        %1171 = vmatpush1.msra.mxu0 0.0
        %1172 = vmatprep.subr.mxu0 0.0
        %1173 = vmatpush1.msra.mxu0 0.0
        %1174 = vmatprep.subr.mxu0 0.0
        %1175 = vmatpush1.msra.mxu0 0.0
        %1176 = vmatprep.subr.mxu0 0.0
        %1177 = vmatpush1.msra.mxu0 0.0
        %1178 = vmatprep.subr.mxu0 0.0
        %1179 = vmatpush1.msra.mxu0 0.0
        %1180 = vmatprep.subr.mxu0 0.0
        %1181 = vmatpush1.msra.mxu0 0.0
        %1182 = vmatprep.subr.mxu0 0.0
        %1183 = vmatpush1.msra.mxu0 0.0
        %1184 = vmatprep.subr.mxu0 0.0
        %1185 = vmatpush1.msra.mxu0 0.0
        %1186 = vmatprep.subr.mxu0 0.0
        %1187 = vmatpush1.msra.mxu0 0.0
        %1188 = vmatprep.subr.mxu0 0.0
        %1189 = vmatpush1.msra.mxu0 0.0
        %1190 = vmatprep.subr.mxu0 0.0
        %1191 = vmatpush1.msra.mxu0 0.0
        %1192 = vmatprep.mubr.f32.mxu0 0.0
        %1193 = vmatmul.mubr.f32.gmra.mrb[0].mxu0 %v761
        %v1194 = vpop.f32.mrb[0].mxu0
        %v1195 = vadd.f32 0.0, %v1194
        %v1196 = vpop.f32.mrb[0].mxu0
        %1197 = vmatprep.mubr.f32.mxu0 0.0
        %1198 = vmatmul.mubr.f32.gmra.mrb[0].mxu0 %v766
        %v1199 = vpop.f32.mrb[0].mxu0
        %v1200 = vadd.f32 0.0, %v1199
        %v1201 = vpop.f32.mrb[0].mxu0
        %1202 = vmatprep.mubr.f32.mxu0 0.0
        %1203 = vmatmul.mubr.f32.gmra.mrb[0].mxu0 %v771
        %v1204 = vpop.f32.mrb[0].mxu0
        %v1205 = vadd.f32 0.0, %v1204
        %v1206 = vpop.f32.mrb[0].mxu0
        %1207 = vmatprep.mubr.f32.mxu0 0.0
        %1208 = vmatmul.mubr.f32.gmra.mrb[0].mxu0 %v776
        %v1209 = vpop.f32.mrb[0].mxu0
        %v1210 = vadd.f32 0.0, %v1209
        %v1211 = vpop.f32.mrb[0].mxu0
        %1212 = vdwg.mxu0
        %v1213 = vadd.f32 %v1124, %v1195
        %v1214 = vadd.f32 %v1125, %v1200
        %v1215 = vadd.f32 %v1126, %v1205
        %v1216 = vadd.f32 %v1127, %v1210
        %1217 = vst [vmem:[#allocation5] sm:$0xff] %v1213
        %1218 = vst [vmem:[#allocation5 + $0x8] sm:$0xff] %v1214
        %1219 = vst [vmem:[#allocation5 + $0x10] sm:$0xff] %v1215
        %1220 = vst [vmem:[#allocation5 + $0x18] sm:$0xff] %v1216
        %1221 = vst [vmem:[#allocation3] sm:$0x1] %v1031
        %p1222 = scmp.eq.s32.totalorder %s30, 1
        // Predicated region
        $region57: #{tpu_custom_call.1} parent=47 // pred_check
          %p1223 = pneg %p1222
        $region58: #{tpu_custom_call.1} parent=47 // pred_check_branch
          %1225 = sbr.rel (%p1223) target = $region60
        $region59: #{tpu_custom_call.1} parent=47 // pred_region
          %v1226 = vld [vmem:[#allocation5] sm:$0xff]
          %v1227 = vld [vmem:[#allocation5 + $0x8] sm:$0xff]
          %v1228 = vld [vmem:[#allocation5 + $0x10] sm:$0xff]
          %v1229 = vld [vmem:[#allocation5 + $0x18] sm:$0xff]
          %v1230 = vld [vmem:[#allocation4] sm:$0x1]
          %v1231 = vrcp.pop %v1230
          %v1232 = vmul.f32 1.0, %v1231
          %v1234 = vlaneseq
          %v1235 = vshrl.u32 %v1234, 7
          %v1236 = vsub.s32 0, %v1235
          %v1237 = vrot.slane %v1232, %v1236
          %v1239 = vmul.f32 %v1226, %v1237
          %v1240 = vmul.f32 %v1227, %v1237
          %v1241 = vmul.f32 %v1228, %v1237
          %v1242 = vmul.f32 %v1229, %v1237
          %v1243 = vld [vmem:[#allocation6] sm:$0xf]
          %v1244 = vld [vmem:[%s437] sm:$0xf]
          %v1246 = vsel %vm815, %v1244, 0
          %1248 = vmatprep.subr.mxu0 0.0
          %1249 = vmatpush1.msra.mxu0 %v1239
          %1250 = vmatprep.subr.mxu0 0.0
          %1251 = vmatpush1.msra.mxu0 %v1240
          %1252 = vmatprep.subr.mxu0 0.0
          %1253 = vmatpush1.msra.mxu0 %v1241
          %1254 = vmatprep.subr.mxu0 0.0
          %1255 = vmatpush1.msra.mxu0 %v1242
          %1256 = vmatprep.subr.mxu0 0.0
          %1257 = vmatpush1.msra.mxu0 0.0
          %1258 = vmatprep.subr.mxu0 0.0
          %1259 = vmatpush1.msra.mxu0 0.0
          %1260 = vmatprep.subr.mxu0 0.0
          %1261 = vmatpush1.msra.mxu0 0.0
          %1262 = vmatprep.subr.mxu0 0.0
          %1263 = vmatpush1.msra.mxu0 0.0
          %1264 = vmatprep.subr.mxu0 0.0
          %1265 = vmatpush1.msra.mxu0 0.0
          %1266 = vmatprep.subr.mxu0 0.0
          %1267 = vmatpush1.msra.mxu0 0.0
          %1268 = vmatprep.subr.mxu0 0.0
          %1269 = vmatpush1.msra.mxu0 0.0
          %1270 = vmatprep.subr.mxu0 0.0
          %1271 = vmatpush1.msra.mxu0 0.0
          %1272 = vmatprep.subr.mxu0 0.0
          %1273 = vmatpush1.msra.mxu0 0.0
          %1274 = vmatprep.subr.mxu0 0.0
          %1275 = vmatpush1.msra.mxu0 0.0
          %1276 = vmatprep.subr.mxu0 0.0
          %1277 = vmatpush1.msra.mxu0 0.0
          %1278 = vmatprep.subr.mxu0 0.0
          %1279 = vmatpush1.msra.mxu0 0.0
          %1280 = vmatprep.subr.mxu0 0.0
          %1281 = vmatpush1.msra.mxu0 0.0
          %1282 = vmatprep.subr.mxu0 0.0
          %1283 = vmatpush1.msra.mxu0 0.0
          %1284 = vmatprep.subr.mxu0 0.0
          %1285 = vmatpush1.msra.mxu0 0.0
          %1286 = vmatprep.subr.mxu0 0.0
          %1287 = vmatpush1.msra.mxu0 0.0
          %1288 = vmatprep.subr.mxu0 0.0
          %1289 = vmatpush1.msra.mxu0 0.0
          %1290 = vmatprep.subr.mxu0 0.0
          %1291 = vmatpush1.msra.mxu0 0.0
          %1292 = vmatprep.subr.mxu0 0.0
          %1293 = vmatpush1.msra.mxu0 0.0
          %1294 = vmatprep.subr.mxu0 0.0
          %1295 = vmatpush1.msra.mxu0 0.0
          %1296 = vmatprep.subr.mxu0 0.0
          %1297 = vmatpush1.msra.mxu0 0.0
          %1298 = vmatprep.subr.mxu0 0.0
          %1299 = vmatpush1.msra.mxu0 0.0
          %1300 = vmatprep.subr.mxu0 0.0
          %1301 = vmatpush1.msra.mxu0 0.0
          %1302 = vmatprep.subr.mxu0 0.0
          %1303 = vmatpush1.msra.mxu0 0.0
          %1304 = vmatprep.subr.mxu0 0.0
          %1305 = vmatpush1.msra.mxu0 0.0
          %1306 = vmatprep.subr.mxu0 0.0
          %1307 = vmatpush1.msra.mxu0 0.0
          %1308 = vmatprep.subr.mxu0 0.0
          %1309 = vmatpush1.msra.mxu0 0.0
          %1310 = vmatprep.subr.mxu0 0.0
          %1311 = vmatpush1.msra.mxu0 0.0
          %1312 = vmatprep.mubr.f32.mxu0 0.0
          %1313 = vmatmul.mubr.f32.gmra.mrb[0].mxu0 %v1246
          %v1314 = vpop.f32.mrb[0].mxu0
          %v1315 = vadd.f32 0.0, %v1314
          %v1316 = vpop.f32.mrb[0].mxu0
          %1317 = vdwg.mxu0
          %v1318 = vadd.f32 %v1243, %v1315
          %1319 = vst [vmem:[#allocation6] sm:$0xf] %v1318
        $region60: #{tpu_custom_call.1} parent=47 // pred_fallthru
          _
        %p1320 = scmp.eq.s32.totalorder %s29, 3
        %p1321 = pnand %p1320, %p1222
        %p1322 = pneg %p1321
        // Predicated region
        $region61: #{tpu_custom_call.1} parent=47 // pred_check
          _
        $region62: #{tpu_custom_call.1} parent=47 // pred_check_branch
          %1324 = sbr.rel (%p1321) target = $region64
        $region63: #{tpu_custom_call.1} parent=47 // pred_region
          %v1325 = vld [vmem:[#allocation6] sm:$0xf]
          %1326 = vst [vmem:[%s398] sm:$0xf] %v1325
        $region64: #{tpu_custom_call.1} parent=47 // pred_fallthru
          _
        %s1327 = sand.u32 %s242, 1
        %s1328 = scalar_lea.sflag [#allocation8], %s1327
        %s1329 = sand.u32 %s242, 1
        %s1330 = smul.addr %s1329, 4
        %s1331 = scalar_lea.vmem [#allocation7], %s1330
        // Predicated region
        $region65: #{tpu_custom_call.1} parent=47 // pred_check
          %p1332 = pneg %p252
        $region66: #{tpu_custom_call.1} parent=47 // pred_check_branch
          %1334 = sbr.rel (%p1332) target = $region68
        $region67: #{tpu_custom_call.1} parent=47 // pred_region
          %s1336 = ssub.s32 64, 64
          %1337 = vsyncadd %s1328, %s1336
          %s1338 = smul.addr %s27, 2
          %s1339 = sadd.s32 %s28, %s1338
          %s1340 = smul.addr %s1339, 64
          %s1341 = scalar_lea.hbm %s7, %s1340
          %s1343 = sshll.u32 %s1331, 4
          %s1344 = int_to_ptr.vmem [resolvable:$true] %s1343
          %1346 = dma.vmem_to_hbm [thread:$0]  %s1344, 64, %s1341, %s1328
        $region68: #{tpu_custom_call.1} parent=47 // pred_fallthru
          _
      $region48: #{tpu_custom_call.1} parent=5 // pred_fallthru
        _
      %p1347 = scmp.le.s32.totalorder 2, %s16
      // Predicated region
      $region69: #{tpu_custom_call.1} parent=5 // pred_check
        %p1348 = pneg %p1347
      $region70: #{tpu_custom_call.1} parent=5 // pred_check_branch
        %1350 = sbr.rel (%p1348) target = $region72
      $region71: #{tpu_custom_call.1} parent=5 // pred_region
        %s1351 = ssub.s32 %s16, 2
        // Predicated region
        $region73: #{tpu_custom_call.1} parent=71 // pred_check
          %p1352 = pneg %p258
        $region74: #{tpu_custom_call.1} parent=71 // pred_check_branch
          %1354 = sbr.rel (%p1352) target = $region76
        $region75: #{tpu_custom_call.1} parent=71 // pred_region
          %s1355 = sand.u32 %s243, 1
          %s1356 = scalar_lea.sflag [#allocation8], %s1355
          %s1357 = sand.u32 %s243, 1
          %s1358 = smul.addr %s1357, 4
          %s1359 = scalar_lea.vmem [#allocation7], %s1358
          %1360 = dma.done %s1356, 64
        $region76: #{tpu_custom_call.1} parent=71 // pred_fallthru
          _
      $region72: #{tpu_custom_call.1} parent=5 // pred_fallthru
        _
    $region6: #{tpu_custom_call.1} parent=1 // loop_footer
      %s20 = sadd.s32 1, %s16
    $region7: #{tpu_custom_call.1} parent=1 // loop_footer_branch
      %15 = sbr.rel target = $region3
    $region8: #{tpu_custom_call.1} parent=1 // loop_exit
      _
    %1361 = vsyncpa [#allocation8], 1
    %s1362 = scalar_lea.sflag [#allocation8], 1
    %1363 = vsyncpa %s1362, 1

</llo_original>
